<compile_context>
chip_gen: v7x
topology: tpu7x:2x2x1
jax: 0.10.0
libtpu: 0.0.40
codegen_flags: <defaults>
</compile_context>

<pallas_src>
import numpy as np
import jax
import jax.numpy as jnp
from jax.experimental import pallas as pl
from jax.experimental.pallas import tpu as pltpu

# ------------------------- configuration (small, synthetic SMPL) -------------
B         = 2                     # batch size
N_VERTS   = 512                   # vertices (real SMPL: 6890); multiple of 128
N_JOINTS  = 24                    # fixed by SMPL math (thetas = 24*3 = 72)
N_BETAS   = 10
N_POSE    = (N_JOINTS - 1) * 9    # 207
K_SHAPE   = 16                    # betas padded to 16 rows (sublane aligned)
K_TOTAL   = 224                   # 16 shape rows + 207 pose rows + 1 zero row
N_FACES   = 64
LANE_TILE = 768                   # 3N = 1536 -> 2 balanced tiles (v7x 2 TCs);
                                  # on single-TC v5e/v6e 1536 (1 step) is ideal.
# VMEM: bf16 dirs tile 224*768*2B ~ 0.34 MB (x2 double-buffer) -> far below
# every generation's default scoped VMEM; no vmem_limit override needed.
# NOTE: at real SMPL scale (3N ~ 20670) keep lane tiling (tile count % 2 == 0
# for v7x) and set vmem_limit_bytes explicitly.

# SMPL kinematic tree parents (what the forward derives from kintree_table)
PARENTS = [0, 0, 0, 0, 1, 2, 3, 4, 5, 6, 7, 8, 9, 9, 9, 12, 13, 14, 16, 17,
           18, 19, 20, 21]
# Joints grouped by tree depth — joints within a level are independent, so the
# 23 sequential 4x4 matmuls collapse to 8 batched level-matmuls.
LEVELS = [[1, 2, 3], [4, 5, 6], [7, 8, 9], [10, 11, 12, 13, 14],
          [15, 16, 17], [18, 19], [20, 21], [22, 23]]


# ------------------------- kernel 1: fused shape+pose blend shapes -----------
def _blend_kernel(coeffs_ref, dirs_ref, base_ref, out_ref):
    # coeffs : [2B, 224] bf16  (rows 0..B-1: betas only; rows B..2B-1: full)
    # dirs   : [224, TILE] bf16 (rows 0..9 shapedirs, 16..222 posedirs, planar)
    # base   : [2B, TILE] f32  (rows 0..B-1: v_template; B..: template+personal)
    # out    : [2B, TILE] f32  (rows 0..B-1: v_shaped;   B..: v_posed)
    out_ref[...] = jnp.dot(coeffs_ref[...], dirs_ref[...],
                           preferred_element_type=jnp.float32) + base_ref[...]


def blend_shapes(coeffs, blend_dirs, bases):
    three_n = blend_dirs.shape[1]
    grid = (three_n // LANE_TILE,)
    return pl.pallas_call(
        _blend_kernel,
        out_shape=jax.ShapeDtypeStruct((2 * B, three_n), jnp.float32),
        grid=grid,
        in_specs=[
            pl.BlockSpec((2 * B, K_TOTAL), lambda t: (0, 0)),
            pl.BlockSpec((K_TOTAL, LANE_TILE), lambda t: (0, t)),
            pl.BlockSpec((2 * B, LANE_TILE), lambda t: (0, t)),
        ],
        out_specs=pl.BlockSpec((2 * B, LANE_TILE), lambda t: (0, t)),
        compiler_params=pltpu.CompilerParams(dimension_semantics=("parallel",)),
    )(coeffs, blend_dirs, bases)


# ------------------------- kernel 2: linear blend skinning (lane-dense) ------
def _skin_kernel(wT_ref, a_ref, vposed_ref, out_ref):
    # wT     : [24, N]                (vertices on the lane axis)
    # a_ref  : [B*16, 24]             column-major 3x4 rows per batch, padded
    # vposed : [B, 3, N] planar       out : [B, 3, N] planar
    # T^T = A_cm @ W^T : per batch rows [T00,T10,T20|T01..|T03,T13,T23] x N
    Tt = jnp.dot(a_ref[...], wT_ref[...], preferred_element_type=jnp.float32)
    for b in range(B):                       # static unroll (B = 2)
        r = b * 16
        vp = vposed_ref[b]                   # [3, N]
        out_ref[b] = (Tt[r + 0:r + 3] * vp[0:1, :]
                      + Tt[r + 3:r + 6] * vp[1:2, :]
                      + Tt[r + 6:r + 9] * vp[2:3, :]
                      + Tt[r + 9:r + 12])    # translation col (trans folded in)


def skinning(weights_T, A_stack, v_posed_planar):
    # Single grid step: one MXU pass covers all batches (sub-microsecond kernel;
    # splitting it over a grid only adds ~0.35 us/step on single-TC chips).
    return pl.pallas_call(
        _skin_kernel,
        out_shape=jax.ShapeDtypeStruct((B, 3, N_VERTS), jnp.float32),
        grid=(1,),
        in_specs=[
            pl.BlockSpec((N_JOINTS, N_VERTS), lambda i: (0, 0)),      # W^T
            pl.BlockSpec((B * 16, N_JOINTS), lambda i: (0, 0)),       # A (cm)
            pl.BlockSpec((B, 3, N_VERTS), lambda i: (0, 0, 0)),       # v_posed
        ],
        out_specs=pl.BlockSpec((B, 3, N_VERTS), lambda i: (0, 0, 0)),
    )(weights_T, A_stack, v_posed_planar)


# ------------------------- plain-JAX glue (tiny 3x3 / 4x4 work) --------------
def rodrigues(r):
    """r: [M, 1, 3] axis-angle -> [M, 3, 3] rotation matrices."""
    # TODO(synk): torch adds N(0, 1e-8) noise before the norm to avoid 0-norm;
    # replaced with a deterministic 1e-16 guard under the sqrt.
    theta = jnp.sqrt(jnp.sum(r * r, axis=(1, 2), keepdims=True) + 1e-16)
    r_hat = r / theta
    cos = jnp.cos(theta)
    z = jnp.zeros_like(r_hat[:, 0, 0])
    m = jnp.stack([z, -r_hat[:, 0, 2], r_hat[:, 0, 1],
                   r_hat[:, 0, 2], z, -r_hat[:, 0, 0],
                   -r_hat[:, 0, 1], r_hat[:, 0, 0], z], axis=1).reshape(-1, 3, 3)
    i_cube = jnp.eye(3, dtype=jnp.float32)[None]
    dot = jnp.matmul(jnp.transpose(r_hat, (0, 2, 1)), r_hat)
    return cos * i_cube + (1.0 - cos) * dot + jnp.sin(theta) * m


def kinematic_transforms(R_big, J):
    """Level-batched kinematic chain. R_big [B,24,3,3], J [B,24,3] -> [B,24,4,4]."""
    parents = jnp.asarray(PARENTS, dtype=jnp.int32)
    offsets = J - J[:, parents]
    offsets = offsets.at[:, 0].set(J[:, 0])            # root keeps absolute J
    bottom = jnp.broadcast_to(jnp.array([0.0, 0.0, 0.0, 1.0], jnp.float32),
                              (B, N_JOINTS, 1, 4))
    G = jnp.concatenate(
        [jnp.concatenate([R_big, offsets[..., None]], axis=3), bottom], axis=2)
    results = [None] * N_JOINTS
    results[0] = G[:, 0]
    for lvl in LEVELS:                                  # 8 batched level matmuls
        P = jnp.stack([results[PARENTS[i]] for i in lvl], axis=1)   # [B,L,4,4]
        Rl = jnp.matmul(P, G[:, jnp.asarray(lvl)])
        for k, i in enumerate(lvl):
            results[i] = Rl[:, k]
    stacked = jnp.stack(results, axis=1)                # [B, 24, 4, 4]
    Jh = jnp.concatenate(
        [J, jnp.zeros((B, N_JOINTS, 1), jnp.float32)], axis=2)[..., None]
    corr = jnp.matmul(stacked, Jh)                      # [B, 24, 4, 1]
    packed = jnp.concatenate(
        [jnp.zeros((B, N_JOINTS, 4, 3), jnp.float32), corr], axis=3)
    return stacked - packed                             # [B, 24, 4, 4]


# ------------------------- SMPL forward (Pallas path) ------------------------
def _smpl_forward(params, betas, thetas, trans):
    # pose rotations / pose feature
    R_big = rodrigues(thetas.reshape(-1, 1, 3)).reshape(B, N_JOINTS, 3, 3)
    lrotmin = (R_big[:, 1:] - jnp.eye(3, dtype=jnp.float32)).reshape(B, N_POSE)

    # stacked coefficient rows: first B rows betas-only -> v_shaped,
    # next B rows [betas | pad | lrotmin | pad] -> v_posed
    c_shape = jnp.concatenate(
        [betas, jnp.zeros((B, K_TOTAL - N_BETAS), jnp.float32)], axis=1)
    c_full = jnp.concatenate(
        [betas, jnp.zeros((B, K_SHAPE - N_BETAS), jnp.float32),
         lrotmin, jnp.zeros((B, K_TOTAL - K_SHAPE - N_POSE), jnp.float32)],
        axis=1)
    coeffs = jnp.concatenate([c_shape, c_full], axis=0).astype(jnp.bfloat16)

    # fused shape+pose blend shapes (Pallas), planar layout
    flat = blend_shapes(coeffs, params["blend_dirs"], params["bases"])  # [2B,3N]
    v_shaped = flat[:B].reshape(B, 3, N_VERTS)
    v_posed = flat[B:].reshape(B, 3, N_VERTS)

    # joint regression: tiny 24x3-per-batch output -> fused XLA op (no launch)
    J = jnp.einsum('jn,bcn->bjc', params["J_regressor"], v_shaped)   # [B,24,3]

    # kinematic chain (plain JAX, level-batched)
    A = kinematic_transforms(R_big, J)                               # [B,24,4,4]
    # Fold the global translation into the joint transforms: LBS weights sum
    # to 1, so sum_j w_j (A_j + t) == (sum_j w_j A_j) + t.
    A = A.at[:, :, :3, 3].add(jnp.broadcast_to(trans[:, None, :],
                                               (B, N_JOINTS, 3)))
    # Column-major 3x4 row order, zero-padded to 16 rows per batch so per-batch
    # slices of T^T stay sublane-aligned in the skinning kernel.
    A_cm = jnp.transpose(A[:, :, :3, :], (0, 3, 2, 1)).reshape(B, 12, N_JOINTS)
    A_stack = jnp.concatenate(
        [A_cm, jnp.zeros((B, 4, N_JOINTS), jnp.float32)], axis=1
    ).reshape(B * 16, N_JOINTS)

    # linear blend skinning (Pallas, lane-dense)
    skinned = skinning(params["weights_T"], A_stack, v_posed)        # [B,3,N]
    result = jnp.transpose(skinned, (0, 2, 1))                       # [B,N,3]

    faces = params["faces"][None]                                    # [1,F,3]
    joints = jnp.zeros((B, 19, 3), jnp.float32)   # reference hard-codes zeros
    return result, faces, joints


smpl_forward = jax.jit(_smpl_forward)


# ------------------------- pure-JAX reference (correctness check) ------------
def _smpl_forward_ref(raw, betas, thetas, trans):
    R_big = rodrigues(thetas.reshape(-1, 1, 3)).reshape(B, N_JOINTS, 3, 3)
    lrotmin = (R_big[:, 1:] - jnp.eye(3, dtype=jnp.float32)).reshape(B, N_POSE)
    v_shaped = jnp.tensordot(betas, raw["shapedirs"], axes=([1], [2])) \
        + raw["v_template"]                                          # [B, N, 3]
    J = jnp.einsum('jn,bnc->bjc', raw["J_regressor"], v_shaped)
    v_posed = v_shaped + jnp.tensordot(lrotmin, raw["posedirs"],
                                       axes=([1], [2])) + raw["v_personal"]
    A = kinematic_transforms(R_big, J)
    T = jnp.einsum('vj,bjrc->bvrc', raw["weights"], A)               # [B,N,4,4]
    vh = jnp.concatenate(
        [v_posed, jnp.ones((B, N_VERTS, 1), jnp.float32)], axis=2)
    v = jnp.einsum('bvrc,bvc->bvr', T, vh)[:, :, :3]
    return v + trans[:, None, :]


smpl_forward_ref = jax.jit(_smpl_forward_ref)


# ------------------------- main ----------------------------------------------
if __name__ == "__main__":
    key = jax.random.PRNGKey(0)
    ks = jax.random.split(key, 10)

    # Raw synthetic SMPL parameters, shapes as in SMPLModel.__init__.
    raw = {
        "shapedirs": 0.01 * jax.random.normal(ks[0], (N_VERTS, 3, N_BETAS),
                                              jnp.float32),
        "posedirs": 0.001 * jax.random.normal(ks[1], (N_VERTS, 3, N_POSE),
                                              jnp.float32),
        "v_template": jax.random.normal(ks[2], (N_VERTS, 3), jnp.float32),
        "v_personal": jnp.zeros((N_VERTS, 3), jnp.float32),
        "weights": jax.nn.softmax(
            jax.random.normal(ks[3], (N_VERTS, N_JOINTS), jnp.float32), axis=1),
        "J_regressor": jax.nn.softmax(
            jax.random.normal(ks[4], (N_JOINTS, N_VERTS), jnp.float32), axis=1),
        "faces": jax.random.randint(ks[5], (N_FACES, 3), 0, N_VERTS,
                                    dtype=jnp.int32),
    }

    # Kernel-side prep: planar (xyz-planar) column layout, padded/aligned fused
    # blend dirs in bf16, stacked f32 bases, transposed weights.
    shapedirs2d = raw["shapedirs"].transpose(2, 1, 0).reshape(N_BETAS,
                                                              3 * N_VERTS)
    posedirs2d = raw["posedirs"].transpose(2, 1, 0).reshape(N_POSE, 3 * N_VERTS)
    blend_dirs = jnp.zeros((K_TOTAL, 3 * N_VERTS), jnp.float32)
    blend_dirs = blend_dirs.at[:N_BETAS].set(shapedirs2d)
    blend_dirs = blend_dirs.at[K_SHAPE:K_SHAPE + N_POSE].set(posedirs2d)
    blend_dirs = blend_dirs.astype(jnp.bfloat16)          # halves the HBM stream

    base_s = raw["v_template"].T.reshape(1, 3 * N_VERTS)
    base_p = (raw["v_template"] + raw["v_personal"]).T.reshape(1, 3 * N_VERTS)
    bases = jnp.concatenate(
        [jnp.tile(base_s, (B, 1)), jnp.tile(base_p, (B, 1))], axis=0)  # [2B,3N]

    params = {
        "blend_dirs": blend_dirs,                                     # [224,3N]
        "bases": bases,                                               # f32
        "weights_T": raw["weights"].T,                                # [24, N]
        "J_regressor": raw["J_regressor"],
        "faces": raw["faces"],
    }

    betas = 0.5 * jax.random.normal(ks[6], (B, N_BETAS), jnp.float32)
    thetas = 0.2 * jax.random.normal(ks[7], (B, 72), jnp.float32)
    trans = jax.random.normal(ks[8], (B, 3), jnp.float32)

    result, faces, joints = smpl_forward(params, betas, thetas, trans)
    jax.block_until_ready(result)

    # correctness: compare against the pure-JAX reference of the torch forward
    result_ref = smpl_forward_ref(raw, betas, thetas, trans)
    jax.block_until_ready(result_ref)

    assert result.shape == (B, N_VERTS, 3) and result.dtype == jnp.float32
    assert faces.shape == (1, N_FACES, 3)
    assert joints.shape == (B, 19, 3)
    assert bool(jnp.all(jnp.isfinite(result)))
    assert np.allclose(np.asarray(result), np.asarray(result_ref),
                       rtol=1e-3, atol=1e-3)
    print("KERNEL_OK")
</pallas_src>

<mosaic_0001>
module attributes {stable_mosaic.version = 11 : i64} {
  func.func @_blend_kernel(%arg0: i32, %arg1: memref<4x224xbf16, #tpu.memory_space<vmem>>, %arg2: memref<224x768xbf16, #tpu.memory_space<vmem>>, %arg3: memref<4x768xf32, #tpu.memory_space<vmem>>, %arg4: memref<4x768xf32, #tpu.memory_space<vmem>>) attributes {dimension_semantics = [#tpu.dimension_semantics<parallel>], iteration_bounds = array<i64: 2>, scalar_prefetch = 0 : i64, scratch_operands = 0 : i64, tpu.core_type = #tpu.core_type<tc>, window_params = [{pipeline_mode = #tpu.pipeline_mode<synchronous>, transform_indices = @transform_0, window_bounds = array<i64: 4, 224>}, {transform_indices = @transform_1, window_bounds = array<i64: 224, 768>}, {transform_indices = @transform_2, window_bounds = array<i64: 4, 768>}, {transform_indices = @transform_3, window_bounds = array<i64: 4, 768>}]} {
    %c0 = arith.constant 0 : index
    %c0_0 = arith.constant 0 : index
    %0 = vector.load %arg1[%c0, %c0_0] : memref<4x224xbf16, #tpu.memory_space<vmem>>, vector<4x224xbf16>
    %c0_1 = arith.constant 0 : index
    %c0_2 = arith.constant 0 : index
    %1 = vector.load %arg2[%c0_1, %c0_2] : memref<224x768xbf16, #tpu.memory_space<vmem>>, vector<224x768xbf16>
    %cst = arith.constant dense<0.000000e+00> : vector<4x768xf32>
    %2 = tpu.matmul %0, %1, %cst {dimension_numbers = #tpu.dot_dimension_numbers<[1], [0], [0], [1], [0, 0, 1, 1], [], []>} : vector<4x224xbf16>, vector<224x768xbf16>, vector<4x768xf32> -> vector<4x768xf32>
    %c0_3 = arith.constant 0 : index
    %c0_4 = arith.constant 0 : index
    %3 = vector.load %arg3[%c0_3, %c0_4] : memref<4x768xf32, #tpu.memory_space<vmem>>, vector<4x768xf32>
    %4 = arith.addf %2, %3 : vector<4x768xf32>
    %c0_5 = arith.constant 0 : index
    %c0_6 = arith.constant 0 : index
    %5 = vector.load %arg4[%c0_5, %c0_6] : memref<4x768xf32, #tpu.memory_space<vmem>>, vector<4x768xf32>
    tpu.vector_store %arg4[%c0_5, %c0_6], %4 {strides = array<i32>} : memref<4x768xf32, #tpu.memory_space<vmem>>, vector<4x768xf32>,
    return
  }
  func.func @transform_0(%arg0: i32) -> (i32, i32) {
    %c0_i32 = arith.constant 0 : i32
    %c0_i32_0 = arith.constant 0 : i32
    %c0_i32_1 = arith.constant 0 : i32
    return %c0_i32, %c0_i32_0 : i32, i32
  }
  func.func @transform_1(%arg0: i32) -> (i32, i32) {
    %c0_i32 = arith.constant 0 : i32
    %c0_i32_0 = arith.constant 0 : i32
    return %c0_i32, %arg0 : i32, i32
  }
  func.func @transform_2(%arg0: i32) -> (i32, i32) {
    %c0_i32 = arith.constant 0 : i32
    %c0_i32_0 = arith.constant 0 : i32
    return %c0_i32, %arg0 : i32, i32
  }
  func.func @transform_3(%arg0: i32) -> (i32, i32) {
    %c0_i32 = arith.constant 0 : i32
    %c0_i32_0 = arith.constant 0 : i32
    return %c0_i32, %arg0 : i32, i32
  }
}

module attributes {stable_mosaic.version = 11 : i64} {
  func.func @_skin_kernel(%arg0: i32, %arg1: memref<24x512xf32, #tpu.memory_space<vmem>>, %arg2: memref<32x24xf32, #tpu.memory_space<vmem>>, %arg3: memref<2x3x512xf32, #tpu.memory_space<vmem>>, %arg4: memref<2x3x512xf32, #tpu.memory_space<vmem>>) attributes {dimension_semantics = [#tpu.dimension_semantics<arbitrary>], iteration_bounds = array<i64: 1>, scalar_prefetch = 0 : i64, scratch_operands = 0 : i64, tpu.core_type = #tpu.core_type<tc>, window_params = [{pipeline_mode = #tpu.pipeline_mode<synchronous>, transform_indices = @transform_0, window_bounds = array<i64: 24, 512>}, {pipeline_mode = #tpu.pipeline_mode<synchronous>, transform_indices = @transform_1, window_bounds = array<i64: 32, 24>}, {pipeline_mode = #tpu.pipeline_mode<synchronous>, transform_indices = @transform_2, window_bounds = array<i64: 2, 3, 512>}, {pipeline_mode = #tpu.pipeline_mode<synchronous>, transform_indices = @transform_3, window_bounds = array<i64: 2, 3, 512>}]} {
    %c0 = arith.constant 0 : index
    %c0_0 = arith.constant 0 : index
    %0 = vector.load %arg2[%c0, %c0_0] : memref<32x24xf32, #tpu.memory_space<vmem>>, vector<32x24xf32>
    %c0_1 = arith.constant 0 : index
    %c0_2 = arith.constant 0 : index
    %1 = vector.load %arg1[%c0_1, %c0_2] : memref<24x512xf32, #tpu.memory_space<vmem>>, vector<24x512xf32>
    %cst = arith.constant dense<0.000000e+00> : vector<32x512xf32>
    %2 = tpu.matmul %0, %1, %cst {dimension_numbers = #tpu.dot_dimension_numbers<[1], [0], [0], [1], [0, 0, 1, 1], [], []>} : vector<32x24xf32>, vector<24x512xf32>, vector<32x512xf32> -> vector<32x512xf32>
    %c0_3 = arith.constant 0 : index
    %c0_4 = arith.constant 0 : index
    %c0_5 = arith.constant 0 : index
    %3 = vector.load %arg3[%c0_3, %c0_4, %c0_5] : memref<2x3x512xf32, #tpu.memory_space<vmem>>, vector<1x3x512xf32>
    %4 = vector.shape_cast %3 : vector<1x3x512xf32> to vector<3x512xf32>
    %5 = vector.extract_strided_slice %2 {offsets = [0, 0], sizes = [3, 512], strides = [1, 1]} : vector<32x512xf32> to vector<3x512xf32>
    %6 = vector.extract_strided_slice %4 {offsets = [0, 0], sizes = [1, 512], strides = [1, 1]} : vector<3x512xf32> to vector<1x512xf32>
    %7 = vector.broadcast %6 : vector<1x512xf32> to vector<3x512xf32>
    %8 = arith.mulf %5, %7 : vector<3x512xf32>
    %9 = vector.extract_strided_slice %2 {offsets = [3, 0], sizes = [3, 512], strides = [1, 1]} : vector<32x512xf32> to vector<3x512xf32>
    %10 = vector.extract_strided_slice %4 {offsets = [1, 0], sizes = [1, 512], strides = [1, 1]} : vector<3x512xf32> to vector<1x512xf32>
    %11 = vector.broadcast %10 : vector<1x512xf32> to vector<3x512xf32>
    %12 = arith.mulf %9, %11 : vector<3x512xf32>
    %13 = arith.addf %8, %12 : vector<3x512xf32>
    %14 = vector.extract_strided_slice %2 {offsets = [6, 0], sizes = [3, 512], strides = [1, 1]} : vector<32x512xf32> to vector<3x512xf32>
    %15 = vector.extract_strided_slice %4 {offsets = [2, 0], sizes = [1, 512], strides = [1, 1]} : vector<3x512xf32> to vector<1x512xf32>
    %16 = vector.broadcast %15 : vector<1x512xf32> to vector<3x512xf32>
    %17 = arith.mulf %14, %16 : vector<3x512xf32>
    %18 = arith.addf %13, %17 : vector<3x512xf32>
    %19 = vector.extract_strided_slice %2 {offsets = [9, 0], sizes = [3, 512], strides = [1, 1]} : vector<32x512xf32> to vector<3x512xf32>
    %20 = arith.addf %18, %19 : vector<3x512xf32>
    %c0_6 = arith.constant 0 : index
    %c0_7 = arith.constant 0 : index
    %c0_8 = arith.constant 0 : index
    %21 = vector.load %arg4[%c0_6, %c0_7, %c0_8] : memref<2x3x512xf32, #tpu.memory_space<vmem>>, vector<1x3x512xf32>
    %22 = vector.shape_cast %21 : vector<1x3x512xf32> to vector<3x512xf32>
    %23 = vector.shape_cast %20 : vector<3x512xf32> to vector<1x3x512xf32>
    tpu.vector_store %arg4[%c0_6, %c0_7, %c0_8], %23 {strides = array<i32>} : memref<2x3x512xf32, #tpu.memory_space<vmem>>, vector<1x3x512xf32>,
    %c1 = arith.constant 1 : index
    %c0_9 = arith.constant 0 : index
    %c0_10 = arith.constant 0 : index
    %24 = vector.load %arg3[%c1, %c0_9, %c0_10] : memref<2x3x512xf32, #tpu.memory_space<vmem>>, vector<1x3x512xf32>
    %25 = vector.shape_cast %24 : vector<1x3x512xf32> to vector<3x512xf32>
    %26 = vector.extract_strided_slice %2 {offsets = [16, 0], sizes = [3, 512], strides = [1, 1]} : vector<32x512xf32> to vector<3x512xf32>
    %27 = vector.extract_strided_slice %25 {offsets = [0, 0], sizes = [1, 512], strides = [1, 1]} : vector<3x512xf32> to vector<1x512xf32>
    %28 = vector.broadcast %27 : vector<1x512xf32> to vector<3x512xf32>
    %29 = arith.mulf %26, %28 : vector<3x512xf32>
    %30 = vector.extract_strided_slice %2 {offsets = [19, 0], sizes = [3, 512], strides = [1, 1]} : vector<32x512xf32> to vector<3x512xf32>
    %31 = vector.extract_strided_slice %25 {offsets = [1, 0], sizes = [1, 512], strides = [1, 1]} : vector<3x512xf32> to vector<1x512xf32>
    %32 = vector.broadcast %31 : vector<1x512xf32> to vector<3x512xf32>
    %33 = arith.mulf %30, %32 : vector<3x512xf32>
    %34 = arith.addf %29, %33 : vector<3x512xf32>
    %35 = vector.extract_strided_slice %2 {offsets = [22, 0], sizes = [3, 512], strides = [1, 1]} : vector<32x512xf32> to vector<3x512xf32>
    %36 = vector.extract_strided_slice %25 {offsets = [2, 0], sizes = [1, 512], strides = [1, 1]} : vector<3x512xf32> to vector<1x512xf32>
    %37 = vector.broadcast %36 : vector<1x512xf32> to vector<3x512xf32>
    %38 = arith.mulf %35, %37 : vector<3x512xf32>
    %39 = arith.addf %34, %38 : vector<3x512xf32>
    %40 = vector.extract_strided_slice %2 {offsets = [25, 0], sizes = [3, 512], strides = [1, 1]} : vector<32x512xf32> to vector<3x512xf32>
    %41 = arith.addf %39, %40 : vector<3x512xf32>
    %c1_11 = arith.constant 1 : index
    %c0_12 = arith.constant 0 : index
    %c0_13 = arith.constant 0 : index
    %42 = vector.load %arg4[%c1_11, %c0_12, %c0_13] : memref<2x3x512xf32, #tpu.memory_space<vmem>>, vector<1x3x512xf32>
    %43 = vector.shape_cast %42 : vector<1x3x512xf32> to vector<3x512xf32>
    %44 = vector.shape_cast %41 : vector<3x512xf32> to vector<1x3x512xf32>
    tpu.vector_store %arg4[%c1_11, %c0_12, %c0_13], %44 {strides = array<i32>} : memref<2x3x512xf32, #tpu.memory_space<vmem>>, vector<1x3x512xf32>,
    return
  }
  func.func @transform_0(%arg0: i32) -> (i32, i32) {
    %c0_i32 = arith.constant 0 : i32
    %c0_i32_0 = arith.constant 0 : i32
    %c0_i32_1 = arith.constant 0 : i32
    return %c0_i32, %c0_i32_0 : i32, i32
  }
  func.func @transform_1(%arg0: i32) -> (i32, i32) {
    %c0_i32 = arith.constant 0 : i32
    %c0_i32_0 = arith.constant 0 : i32
    %c0_i32_1 = arith.constant 0 : i32
    return %c0_i32, %c0_i32_0 : i32, i32
  }
  func.func @transform_2(%arg0: i32) -> (i32, i32, i32) {
    %c0_i32 = arith.constant 0 : i32
    %c0_i32_0 = arith.constant 0 : i32
    %c0_i32_1 = arith.constant 0 : i32
    %c0_i32_2 = arith.constant 0 : i32
    return %c0_i32, %c0_i32_0, %c0_i32_1 : i32, i32, i32
  }
  func.func @transform_3(%arg0: i32) -> (i32, i32, i32) {
    %c0_i32 = arith.constant 0 : i32
    %c0_i32_0 = arith.constant 0 : i32
    %c0_i32_1 = arith.constant 0 : i32
    %c0_i32_2 = arith.constant 0 : i32
    return %c0_i32, %c0_i32_0, %c0_i32_1 : i32, i32, i32
  }
}

</mosaic_0001>

<llo_original>
// kernel: _smpl_forward.2
$region0: #{_smpl_forward.2}
  #allocation0 [shape = 'u32[]', space=smem, size = 0x4, offset = 0x4, fixed_abs, tag = 'smem constant byte address 0x4 - core index']
  #allocation1 [shape = 'u32[144,128]{1,0:T(1,128)}', space=vmem, size = 0x12000, scoped, tag = 'internal scratch']
  %s0 = inlined_call_operand.vmem [shape: bf16[4,224], index: 0, kind: input, shape index: {}]
  %s1 = inlined_call_operand.hbm [shape: bf16[224,1536], index: 1, kind: input, shape index: {}]
  %s2 = inlined_call_operand.vmem [shape: f32[4,1536], index: 2, kind: input, shape index: {}]
  %s3 = inlined_call_operand.vmem [shape: f32[4,1536], index: 3, kind: output, shape index: {}]
  %s4 = sld [smem:[#allocation0]]
  $region49: #{_smpl_forward.2} parent=0
    _
  %s6 = ssub.s32 1, %s4
  %s7 = scalar_select 0, %s6, %s4
  $region1: #{_smpl_forward.2} parent=0
    #allocation2 [shape = 'u8[688128]{0}', space=vmem, size = 0xa8000, scoped, tag = 'input window, operand 1']
    #allocation3 [shape = 's32[2]{0}', space=sflag, size = 0x8, scoped, tag = 'scoped memory for _smpl_forward.2']
    %8 = vsyncpa [#allocation3], 0
    %s9 = scalar_lea.sflag [#allocation3], 1
    %10 = vsyncpa %s9, 0
    loop: start=0, step=1, limit=4
    $region2: #{_smpl_forward.2} parent=1 // loop_pre_header
      _
    $region3: #{_smpl_forward.2} parent=1 // loop_header
      %s12 = sphi 0, %s16
      %p13 = scmp.ge.s32.totalorder %s12, 4
      %s20 = sphi 0, %s20
      %s22 = sphi 0, %s20
      %s23 = sphi 0, %s22
      %s37 = sphi 0, %s23
      %s43 = sphi 0, %s45
      %s46 = sphi 0, %s43
      %s47 = sphi 0, %s46
      %s63 = sphi 0, %s47
      %s69 = sphi 0, %s71
      %s72 = sphi 0, %s69
      %s73 = sphi 0, %s72
      %s89 = sphi 0, %s73
      %s95 = sphi 0, %s97
      %s98 = sphi 0, %s95
      %s99 = sphi 0, %s98
      %s115 = sphi 0, %s99
    $region4: #{_smpl_forward.2} parent=1 // loop_header_branch
      %15 = sbr.rel (%p13) target = $region8
    $region5: #{_smpl_forward.2} parent=1 // loop_body
      %s17 = ssub.s32 %s12, 1
      %s18 = ssub.s32 %s12, 2
      %s19 = sadd.s32 %s12, 1
      %s21 = sadd.s32 %s20, 1
      %p24 = scmp.eq.s32.totalorder %s12, 1
      %p25 = scmp.ne.s32.totalorder %s20, %s22
      %p26 = scmp.eq.s32.totalorder %s12, 0
      %p27 = por %p25, %p26
      %p28 = scmp.ne.s32.totalorder %s20, %s22
      %p29 = scmp.eq.s32.totalorder %s17, 1
      %p30 = por %p28, %p29
      %p31 = scmp.ne.s32.totalorder %s22, %s23
      %p32 = scmp.eq.s32.totalorder %s17, 0
      %p33 = por %p31, %p32
      %p34 = scmp.ne.s32.totalorder %s22, %s23
      %p35 = scmp.eq.s32.totalorder %s18, 1
      %p36 = por %p34, %p35
      %p38 = scmp.ne.s32.totalorder %s23, %s37
      %p39 = scmp.eq.s32.totalorder %s18, 0
      %p40 = por %p38, %p39
      %s41 = ssub.s32 %s12, %s19
      %p42 = scmp.eq.s32.totalorder %s41, 0
      %s44 = sadd.s32 %s43, 1
      %s45 = scalar_select %p42, %s43, %s44
      %p48 = pneg %p42
      %p49 = scmp.eq.s32.totalorder %s12, 1
      %p50 = por %p48, %p49
      %p51 = scmp.ne.s32.totalorder %s43, %s46
      %p52 = scmp.eq.s32.totalorder %s12, 0
      %p53 = por %p51, %p52
      %p54 = scmp.ne.s32.totalorder %s43, %s46
      %p55 = scmp.eq.s32.totalorder %s17, 1
      %p56 = por %p54, %p55
      %p57 = scmp.ne.s32.totalorder %s46, %s47
      %p58 = scmp.eq.s32.totalorder %s17, 0
      %p59 = por %p57, %p58
      %p60 = scmp.ne.s32.totalorder %s46, %s47
      %p61 = scmp.eq.s32.totalorder %s18, 1
      %p62 = por %p60, %p61
      %p64 = scmp.ne.s32.totalorder %s47, %s63
      %p65 = scmp.eq.s32.totalorder %s18, 0
      %p66 = por %p64, %p65
      %s67 = ssub.s32 %s12, %s19
      %p68 = scmp.eq.s32.totalorder %s67, 0
      %s70 = sadd.s32 %s69, 1
      %s71 = scalar_select %p68, %s69, %s70
      %p74 = pneg %p68
      %p75 = scmp.eq.s32.totalorder %s12, 1
      %p76 = por %p74, %p75
      %p77 = scmp.ne.s32.totalorder %s69, %s72
      %p78 = scmp.eq.s32.totalorder %s12, 0
      %p79 = por %p77, %p78
      %p80 = scmp.ne.s32.totalorder %s69, %s72
      %p81 = scmp.eq.s32.totalorder %s17, 1
      %p82 = por %p80, %p81
      %p83 = scmp.ne.s32.totalorder %s72, %s73
      %p84 = scmp.eq.s32.totalorder %s17, 0
      %p85 = por %p83, %p84
      %p86 = scmp.ne.s32.totalorder %s72, %s73
      %p87 = scmp.eq.s32.totalorder %s18, 1
      %p88 = por %p86, %p87
      %p90 = scmp.ne.s32.totalorder %s73, %s89
      %p91 = scmp.eq.s32.totalorder %s18, 0
      %p92 = por %p90, %p91
      %s93 = ssub.s32 %s12, %s19
      %p94 = scmp.eq.s32.totalorder %s93, 0
      %s96 = sadd.s32 %s95, 1
      %s97 = scalar_select %p94, %s95, %s96
      %p100 = pneg %p94
      %p101 = scmp.eq.s32.totalorder %s12, 1
      %p102 = por %p100, %p101
      %p103 = scmp.ne.s32.totalorder %s95, %s98
      %p104 = scmp.eq.s32.totalorder %s12, 0
      %p105 = por %p103, %p104
      %p106 = scmp.ne.s32.totalorder %s95, %s98
      %p107 = scmp.eq.s32.totalorder %s17, 1
      %p108 = por %p106, %p107
      %p109 = scmp.ne.s32.totalorder %s98, %s99
      %p110 = scmp.eq.s32.totalorder %s17, 0
      %p111 = por %p109, %p110
      %p112 = scmp.ne.s32.totalorder %s98, %s99
      %p113 = scmp.eq.s32.totalorder %s18, 1
      %p114 = por %p112, %p113
      %p116 = scmp.ne.s32.totalorder %s99, %s115
      %p117 = scmp.eq.s32.totalorder %s18, 0
      %p118 = por %p116, %p117
      %p119 = scmp.le.s32.totalorder 1, %s12
      %p120 = scmp.lt.s32.totalorder %s12, 3
      %p121 = pnand %p119, %p120
      %p122 = pneg %p121
      // Predicated region
      $region9: #{_smpl_forward.2} parent=5 // pred_check
        _
      $region10: #{_smpl_forward.2} parent=5 // pred_check_branch
        %124 = sbr.rel (%p121) target = $region12
      $region11: #{_smpl_forward.2} parent=5 // pred_region
        %s125 = ssub.s32 %s12, 1
        // Predicated region
        $region13: #{_smpl_forward.2} parent=11 // pred_check
          %p126 = pneg %p33
        $region14: #{_smpl_forward.2} parent=11 // pred_check_branch
          %128 = sbr.rel (%p126) target = $region16
        $region15: #{_smpl_forward.2} parent=11 // pred_region
          _
        $region16: #{_smpl_forward.2} parent=11 // pred_fallthru
          _
      $region12: #{_smpl_forward.2} parent=5 // pred_fallthru
        _
      %p129 = scmp.lt.s32.totalorder %s12, 2
      // Predicated region
      $region17: #{_smpl_forward.2} parent=5 // pred_check
        %p130 = pneg %p129
      $region18: #{_smpl_forward.2} parent=5 // pred_check_branch
        %132 = sbr.rel (%p130) target = $region20
      $region19: #{_smpl_forward.2} parent=5 // pred_region
        // Predicated region
        $region21: #{_smpl_forward.2} parent=19 // pred_check
          %p133 = pneg %p53
        $region22: #{_smpl_forward.2} parent=19 // pred_check_branch
          %135 = sbr.rel (%p133) target = $region24
        $region23: #{_smpl_forward.2} parent=19 // pred_region
          %s136 = sand.u32 %s43, 1
          %s137 = scalar_lea.sflag [#allocation3], %s136
          %s138 = sand.u32 %s43, 1
          %s139 = smul.addr %s138, 672
          %s140 = scalar_lea.vmem [#allocation2], %s139
          %s141 = smul.u32 6, %s12
          %s143 = ssub.s32 10752, 10752
          %144 = vsyncadd %s137, %s143
          %s145 = smul.addr %s141, 64
          %s146 = scalar_lea.hbm %s1, %s145
          %s147 = sshll.u32 %s140, 4
          %s148 = int_to_ptr.vmem [resolvable:$true] %s147
          %153 = dma.hbm_to_vmem [thread:$0]  %s146, 10752, %s148, %s137, 768, 384, 24
        $region24: #{_smpl_forward.2} parent=19 // pred_fallthru
          _
        // Predicated region
        $region25: #{_smpl_forward.2} parent=19 // pred_check
          %p154 = pneg %p79
        $region26: #{_smpl_forward.2} parent=19 // pred_check_branch
          %156 = sbr.rel (%p154) target = $region28
        $region27: #{_smpl_forward.2} parent=19 // pred_region
          %s157 = smul.u32 6, %s12
          %p158 = scmp.lt.s32.totalorder %s157, 11
          %s159 = scalar_select %p158, %s157, 11
          %s160 = smul.addr %s159, 4
          %s161 = scalar_lea.vmem %s2, %s160
          %s162 = smul.u32 6, %s12
        $region28: #{_smpl_forward.2} parent=19 // pred_fallthru
          _
      $region20: #{_smpl_forward.2} parent=5 // pred_fallthru
        _
      %p163 = scmp.le.s32.totalorder 1, %s12
      %p164 = scmp.lt.s32.totalorder %s12, 3
      %p165 = pnand %p163, %p164
      %p166 = pneg %p165
      // Predicated region
      $region29: #{_smpl_forward.2} parent=5 // pred_check
        _
      $region30: #{_smpl_forward.2} parent=5 // pred_check_branch
        %168 = sbr.rel (%p165) target = $region32
      $region31: #{_smpl_forward.2} parent=5 // pred_region
        %s169 = ssub.s32 %s12, 1
        %s170 = sand.u32 %s46, 1
        %s171 = scalar_lea.sflag [#allocation3], %s170
        %s172 = sand.u32 %s46, 1
        %s173 = smul.addr %s172, 672
        %s174 = scalar_lea.vmem [#allocation2], %s173
        // Predicated region
        $region33: #{_smpl_forward.2} parent=31 // pred_check
          %p175 = pneg %p59
        $region34: #{_smpl_forward.2} parent=31 // pred_check_branch
          %177 = sbr.rel (%p175) target = $region36
        $region35: #{_smpl_forward.2} parent=31 // pred_region
          %178 = dma.done %s171, 10752
        $region36: #{_smpl_forward.2} parent=31 // pred_fallthru
          _
        %p179 = pneg %p33
        %p180 = pneg %p30
        %s181 = sand.u32 %s46, 1
        %s182 = scalar_lea.sflag [#allocation3], %s181
        %s183 = sand.u32 %s46, 1
        %s184 = smul.addr %s183, 672
        %s185 = scalar_lea.vmem [#allocation2], %s184
        %p186 = pneg %p59
        %p187 = pneg %p56
        %s188 = smul.u32 6, %s17
        %p189 = scmp.lt.s32.totalorder %s188, 11
        %s190 = scalar_select %p189, %s188, 11
        %s191 = smul.addr %s190, 4
        %s192 = scalar_lea.vmem %s2, %s191
        %p193 = pneg %p85
        %p194 = pneg %p82
        %p195 = pneg %p111
        %p196 = pneg %p108
        %s197 = smul.u32 6, %s17
        %p198 = scmp.lt.s32.totalorder %s197, 11
        %s199 = scalar_select %p198, %s197, 11
        %s200 = smul.addr %s199, 4
        %s201 = scalar_lea.vmem %s3, %s200
        %s202 = smul.u32 6, %s17
        %s203 = smul.u32 6, %s17
        %p204 = scmp.lt.s32.totalorder %s203, 11
        %s205 = scalar_select %p204, %s203, 11
        %s206 = smul.addr %s205, 4
        %s207 = scalar_lea.vmem %s2, %s206
        %s208 = smul.u32 6, %s17
        %s209 = smul.u32 6, %s17
        %p210 = scmp.lt.s32.totalorder %s209, 11
        %s211 = scalar_select %p210, %s209, 11
        %s212 = smul.addr %s211, 4
        %s213 = scalar_lea.vmem %s3, %s212
        %s214 = smul.u32 6, %s17
        %v216 = vld [vmem:[%s0] sm:$0xf]
        %v217 = vld [vmem:[%s174] sm:$0xff]
        %v218 = vld [vmem:[%s174 + $0x8] sm:$0xff]
        %v219 = vld [vmem:[%s174 + $0x10] sm:$0xff]
        %v220 = vld [vmem:[%s174 + $0x18] sm:$0xff]
        %v221 = vld [vmem:[%s174 + $0x20] sm:$0xff]
        %v222 = vld [vmem:[%s174 + $0x28] sm:$0xff]
        %v223 = vld [vmem:[%s174 + $0x30] sm:$0xff]
        %v224 = vld [vmem:[%s174 + $0x38] sm:$0xff]
        %v225 = vld [vmem:[%s174 + $0x40] sm:$0xff]
        %v226 = vld [vmem:[%s174 + $0x48] sm:$0xff]
        %v227 = vld [vmem:[%s174 + $0x50] sm:$0xff]
        %v228 = vld [vmem:[%s174 + $0x58] sm:$0xff]
        %v229 = vld [vmem:[%s174 + $0x60] sm:$0xff]
        %v230 = vld [vmem:[%s174 + $0x68] sm:$0xff]
        %v231 = vld [vmem:[%s174 + $0x70] sm:$0xff]
        %v232 = vld [vmem:[%s174 + $0x78] sm:$0xff]
        %v233 = vld [vmem:[%s174 + $0x80] sm:$0xff]
        %v234 = vld [vmem:[%s174 + $0x88] sm:$0xff]
        %v235 = vld [vmem:[%s174 + $0x90] sm:$0xff]
        %v236 = vld [vmem:[%s174 + $0x98] sm:$0xff]
        %v237 = vld [vmem:[%s174 + $0xa0] sm:$0xff]
        %v238 = vld [vmem:[%s174 + $0xa8] sm:$0xff]
        %v239 = vld [vmem:[%s174 + $0xb0] sm:$0xff]
        %v240 = vld [vmem:[%s174 + $0xb8] sm:$0xff]
        %v241 = vld [vmem:[%s174 + $0xc0] sm:$0xff]
        %v242 = vld [vmem:[%s174 + $0xc8] sm:$0xff]
        %v243 = vld [vmem:[%s174 + $0xd0] sm:$0xff]
        %v244 = vld [vmem:[%s174 + $0xd8] sm:$0xff]
        %v245 = vld [vmem:[%s174 + $0xe0] sm:$0xff]
        %v246 = vld [vmem:[%s174 + $0xe8] sm:$0xff]
        %v247 = vld [vmem:[%s174 + $0xf0] sm:$0xff]
        %v248 = vld [vmem:[%s174 + $0xf8] sm:$0xff]
        %v249 = vld [vmem:[%s174 + $0x100] sm:$0xff]
        %v250 = vld [vmem:[%s174 + $0x108] sm:$0xff]
        %v251 = vld [vmem:[%s174 + $0x110] sm:$0xff]
        %v252 = vld [vmem:[%s174 + $0x118] sm:$0xff]
        %v253 = vld [vmem:[%s174 + $0x120] sm:$0xff]
        %v254 = vld [vmem:[%s174 + $0x128] sm:$0xff]
        %v255 = vld [vmem:[%s174 + $0x130] sm:$0xff]
        %v256 = vld [vmem:[%s174 + $0x138] sm:$0xff]
        %v257 = vld [vmem:[%s174 + $0x140] sm:$0xff]
        %v258 = vld [vmem:[%s174 + $0x148] sm:$0xff]
        %v259 = vld [vmem:[%s174 + $0x150] sm:$0xff]
        %v260 = vld [vmem:[%s174 + $0x158] sm:$0xff]
        %v261 = vld [vmem:[%s174 + $0x160] sm:$0xff]
        %v262 = vld [vmem:[%s174 + $0x168] sm:$0xff]
        %v263 = vld [vmem:[%s174 + $0x170] sm:$0xff]
        %v264 = vld [vmem:[%s174 + $0x178] sm:$0xff]
        %v265 = vld [vmem:[%s174 + $0x180] sm:$0xff]
        %v266 = vld [vmem:[%s174 + $0x188] sm:$0xff]
        %v267 = vld [vmem:[%s174 + $0x190] sm:$0xff]
        %v268 = vld [vmem:[%s174 + $0x198] sm:$0xff]
        %v269 = vld [vmem:[%s174 + $0x1a0] sm:$0xff]
        %v270 = vld [vmem:[%s174 + $0x1a8] sm:$0xff]
        %v271 = vld [vmem:[%s174 + $0x1b0] sm:$0xff]
        %v272 = vld [vmem:[%s174 + $0x1b8] sm:$0xff]
        %v273 = vld [vmem:[%s174 + $0x1c0] sm:$0xff]
        %v274 = vld [vmem:[%s174 + $0x1c8] sm:$0xff]
        %v275 = vld [vmem:[%s174 + $0x1d0] sm:$0xff]
        %v276 = vld [vmem:[%s174 + $0x1d8] sm:$0xff]
        %v277 = vld [vmem:[%s174 + $0x1e0] sm:$0xff]
        %v278 = vld [vmem:[%s174 + $0x1e8] sm:$0xff]
        %v279 = vld [vmem:[%s174 + $0x1f0] sm:$0xff]
        %v280 = vld [vmem:[%s174 + $0x1f8] sm:$0xff]
        %v281 = vld [vmem:[%s174 + $0x200] sm:$0xff]
        %v282 = vld [vmem:[%s174 + $0x208] sm:$0xff]
        %v283 = vld [vmem:[%s174 + $0x210] sm:$0xff]
        %v284 = vld [vmem:[%s174 + $0x218] sm:$0xff]
        %v285 = vld [vmem:[%s174 + $0x220] sm:$0xff]
        %v286 = vld [vmem:[%s174 + $0x228] sm:$0xff]
        %v287 = vld [vmem:[%s174 + $0x230] sm:$0xff]
        %v288 = vld [vmem:[%s174 + $0x238] sm:$0xff]
        %v289 = vld [vmem:[%s174 + $0x240] sm:$0xff]
        %v290 = vld [vmem:[%s174 + $0x248] sm:$0xff]
        %v291 = vld [vmem:[%s174 + $0x250] sm:$0xff]
        %v292 = vld [vmem:[%s174 + $0x258] sm:$0xff]
        %v293 = vld [vmem:[%s174 + $0x260] sm:$0xff]
        %v294 = vld [vmem:[%s174 + $0x268] sm:$0xff]
        %v295 = vld [vmem:[%s174 + $0x270] sm:$0xff]
        %v296 = vld [vmem:[%s174 + $0x278] sm:$0xff]
        %v297 = vld [vmem:[%s174 + $0x280] sm:$0xff]
        %v298 = vld [vmem:[%s174 + $0x288] sm:$0xff]
        %v299 = vld [vmem:[%s174 + $0x290] sm:$0xff]
        %v300 = vld [vmem:[%s174 + $0x298] sm:$0xff]
        %v301 = vld [vmem:[%s207] sm:$0xff]
        %v302 = vld [vmem:[%s207 + $0x8] sm:$0xff]
        %v303 = vld [vmem:[%s207 + $0x10] sm:$0xff]
        %v306 = vunpack.c.l.s4 1983009808
        %v307 = vunpack.c.0.s8 %v306
        %v308 = vlaneseq
        %v309 = vshrl.u32 %v308, 7
        %v310 = vsub.s32 %v307, %v309
        %v311 = vrot.slane %v216, %v310
        %v312 = vcombine.high %v311, %v311
        %v398 = vunpack.c.l.b16 %v217
        %v399 = vunpack.c.h.b16 %v217
        %v400 = vunpack.c.l.b16 %v218
        %v401 = vunpack.c.h.b16 %v218
        %v402 = vunpack.c.l.b16 %v219
        %v403 = vunpack.c.h.b16 %v219
        %v404 = vunpack.c.l.b16 %v220
        %v405 = vunpack.c.h.b16 %v220
        %v406 = vunpack.c.l.b16 %v221
        %v407 = vunpack.c.h.b16 %v221
        %v408 = vunpack.c.l.b16 %v222
        %v409 = vunpack.c.h.b16 %v222
        %v410 = vunpack.c.l.b16 %v223
        %v411 = vunpack.c.h.b16 %v223
        %v412 = vunpack.c.l.b16 %v224
        %v413 = vunpack.c.h.b16 %v224
        %v414 = vunpack.c.l.b16 %v225
        %v415 = vunpack.c.h.b16 %v225
        %v416 = vunpack.c.l.b16 %v226
        %v417 = vunpack.c.h.b16 %v226
        %v418 = vunpack.c.l.b16 %v227
        %v419 = vunpack.c.h.b16 %v227
        %v420 = vunpack.c.l.b16 %v228
        %v421 = vunpack.c.h.b16 %v228
        %v422 = vunpack.c.l.b16 %v229
        %v423 = vunpack.c.h.b16 %v229
        %v424 = vunpack.c.l.b16 %v230
        %v425 = vunpack.c.h.b16 %v230
        %v426 = vunpack.c.l.b16 %v231
        %v427 = vunpack.c.h.b16 %v231
        %v428 = vunpack.c.l.b16 %v232
        %v429 = vunpack.c.h.b16 %v232
        %v430 = vunpack.c.l.b16 %v233
        %v431 = vunpack.c.h.b16 %v233
        %v432 = vunpack.c.l.b16 %v234
        %v433 = vunpack.c.h.b16 %v234
        %v434 = vunpack.c.l.b16 %v235
        %v435 = vunpack.c.h.b16 %v235
        %v436 = vunpack.c.l.b16 %v236
        %v437 = vunpack.c.h.b16 %v236
        %v438 = vunpack.c.l.b16 %v237
        %v439 = vunpack.c.h.b16 %v237
        %v440 = vunpack.c.l.b16 %v238
        %v441 = vunpack.c.h.b16 %v238
        %v442 = vunpack.c.l.b16 %v239
        %v443 = vunpack.c.h.b16 %v239
        %v444 = vunpack.c.l.b16 %v240
        %v445 = vunpack.c.h.b16 %v240
        %v446 = vunpack.c.l.b16 %v241
        %v447 = vunpack.c.h.b16 %v241
        %v448 = vunpack.c.l.b16 %v242
        %v449 = vunpack.c.h.b16 %v242
        %v450 = vunpack.c.l.b16 %v243
        %v451 = vunpack.c.h.b16 %v243
        %v452 = vunpack.c.l.b16 %v244
        %v453 = vunpack.c.h.b16 %v244
        %v454 = vunpack.c.l.b16 %v245
        %v455 = vunpack.c.h.b16 %v245
        %v456 = vunpack.c.l.b16 %v246
        %v457 = vunpack.c.h.b16 %v246
        %v458 = vunpack.c.l.b16 %v247
        %v459 = vunpack.c.h.b16 %v247
        %v460 = vunpack.c.l.b16 %v248
        %v461 = vunpack.c.h.b16 %v248
        %v462 = vunpack.c.l.b16 %v249
        %v463 = vunpack.c.h.b16 %v249
        %v464 = vunpack.c.l.b16 %v250
        %v465 = vunpack.c.h.b16 %v250
        %v466 = vunpack.c.l.b16 %v251
        %v467 = vunpack.c.h.b16 %v251
        %v468 = vunpack.c.l.b16 %v252
        %v469 = vunpack.c.h.b16 %v252
        %v470 = vunpack.c.l.b16 %v253
        %v471 = vunpack.c.h.b16 %v253
        %v472 = vunpack.c.l.b16 %v254
        %v473 = vunpack.c.h.b16 %v254
        %v474 = vunpack.c.l.b16 %v255
        %v475 = vunpack.c.h.b16 %v255
        %v476 = vunpack.c.l.b16 %v256
        %v477 = vunpack.c.h.b16 %v256
        %v478 = vunpack.c.l.b16 %v257
        %v479 = vunpack.c.h.b16 %v257
        %v480 = vunpack.c.l.b16 %v258
        %v481 = vunpack.c.h.b16 %v258
        %v482 = vunpack.c.l.b16 %v259
        %v483 = vunpack.c.h.b16 %v259
        %v484 = vunpack.c.l.b16 %v260
        %v485 = vunpack.c.h.b16 %v260
        %v486 = vunpack.c.l.b16 %v261
        %v487 = vunpack.c.h.b16 %v261
        %v488 = vunpack.c.l.b16 %v262
        %v489 = vunpack.c.h.b16 %v262
        %v490 = vunpack.c.l.b16 %v263
        %v491 = vunpack.c.h.b16 %v263
        %v492 = vunpack.c.l.b16 %v264
        %v493 = vunpack.c.h.b16 %v264
        %v494 = vunpack.c.l.b16 %v265
        %v495 = vunpack.c.h.b16 %v265
        %v496 = vunpack.c.l.b16 %v266
        %v497 = vunpack.c.h.b16 %v266
        %v498 = vunpack.c.l.b16 %v267
        %v499 = vunpack.c.h.b16 %v267
        %v500 = vunpack.c.l.b16 %v268
        %v501 = vunpack.c.h.b16 %v268
        %v502 = vunpack.c.l.b16 %v269
        %v503 = vunpack.c.h.b16 %v269
        %v504 = vunpack.c.l.b16 %v270
        %v505 = vunpack.c.h.b16 %v270
        %v506 = vunpack.c.l.b16 %v271
        %v507 = vunpack.c.h.b16 %v271
        %v508 = vunpack.c.l.b16 %v272
        %v509 = vunpack.c.h.b16 %v272
        %v510 = vunpack.c.l.b16 %v273
        %v511 = vunpack.c.h.b16 %v273
        %v512 = vunpack.c.l.b16 %v274
        %v513 = vunpack.c.h.b16 %v274
        %v514 = vunpack.c.l.b16 %v275
        %v515 = vunpack.c.h.b16 %v275
        %v516 = vunpack.c.l.b16 %v276
        %v517 = vunpack.c.h.b16 %v276
        %v518 = vunpack.c.l.b16 %v277
        %v519 = vunpack.c.h.b16 %v277
        %v520 = vunpack.c.l.b16 %v278
        %v521 = vunpack.c.h.b16 %v278
        %v522 = vunpack.c.l.b16 %v279
        %v523 = vunpack.c.h.b16 %v279
        %v524 = vunpack.c.l.b16 %v280
        %v525 = vunpack.c.h.b16 %v280
        %v526 = vunpack.c.l.b16 %v281
        %v527 = vunpack.c.h.b16 %v281
        %v528 = vunpack.c.l.b16 %v282
        %v529 = vunpack.c.h.b16 %v282
        %v530 = vunpack.c.l.b16 %v283
        %v531 = vunpack.c.h.b16 %v283
        %v532 = vunpack.c.l.b16 %v284
        %v533 = vunpack.c.h.b16 %v284
        %v534 = vunpack.c.l.b16 %v285
        %v535 = vunpack.c.h.b16 %v285
        %v536 = vunpack.c.l.b16 %v286
        %v537 = vunpack.c.h.b16 %v286
        %v538 = vunpack.c.l.b16 %v287
        %v539 = vunpack.c.h.b16 %v287
        %v540 = vunpack.c.l.b16 %v288
        %v541 = vunpack.c.h.b16 %v288
        %v542 = vunpack.c.l.b16 %v289
        %v543 = vunpack.c.h.b16 %v289
        %v544 = vunpack.c.l.b16 %v290
        %v545 = vunpack.c.h.b16 %v290
        %v546 = vunpack.c.l.b16 %v291
        %v547 = vunpack.c.h.b16 %v291
        %v548 = vunpack.c.l.b16 %v292
        %v549 = vunpack.c.h.b16 %v292
        %v550 = vunpack.c.l.b16 %v293
        %v551 = vunpack.c.h.b16 %v293
        %v552 = vunpack.c.l.b16 %v294
        %v553 = vunpack.c.h.b16 %v294
        %v554 = vunpack.c.l.b16 %v295
        %v555 = vunpack.c.h.b16 %v295
        %v556 = vunpack.c.l.b16 %v296
        %v557 = vunpack.c.h.b16 %v296
        %v558 = vunpack.c.l.b16 %v297
        %v559 = vunpack.c.h.b16 %v297
        %v560 = vunpack.c.l.b16 %v298
        %v561 = vunpack.c.h.b16 %v298
        %v562 = vunpack.c.l.b16 %v299
        %v563 = vunpack.c.h.b16 %v299
        %v564 = vunpack.c.l.b16 %v300
        %v565 = vunpack.c.h.b16 %v300
        %v566 = vpack.c.b16 %v404, %v398
        %v567 = vpack.c.b16 %v405, %v399
        %v568 = vpack.c.b16 %v406, %v400
        %v569 = vpack.c.b16 %v407, %v401
        %v570 = vpack.c.b16 %v408, %v402
        %v571 = vpack.c.b16 %v409, %v403
        %v572 = vpack.c.b16 %v416, %v410
        %v573 = vpack.c.b16 %v417, %v411
        %v574 = vpack.c.b16 %v418, %v412
        %v575 = vpack.c.b16 %v419, %v413
        %v576 = vpack.c.b16 %v420, %v414
        %v577 = vpack.c.b16 %v421, %v415
        %v578 = vpack.c.b16 %v428, %v422
        %v579 = vpack.c.b16 %v429, %v423
        %v580 = vpack.c.b16 %v430, %v424
        %v581 = vpack.c.b16 %v431, %v425
        %v582 = vpack.c.b16 %v432, %v426
        %v583 = vpack.c.b16 %v433, %v427
        %v584 = vpack.c.b16 %v440, %v434
        %v585 = vpack.c.b16 %v441, %v435
        %v586 = vpack.c.b16 %v442, %v436
        %v587 = vpack.c.b16 %v443, %v437
        %v588 = vpack.c.b16 %v444, %v438
        %v589 = vpack.c.b16 %v445, %v439
        %v590 = vpack.c.b16 %v452, %v446
        %v591 = vpack.c.b16 %v453, %v447
        %v592 = vpack.c.b16 %v454, %v448
        %v593 = vpack.c.b16 %v455, %v449
        %v594 = vpack.c.b16 %v456, %v450
        %v595 = vpack.c.b16 %v457, %v451
        %v596 = vpack.c.b16 %v464, %v458
        %v597 = vpack.c.b16 %v465, %v459
        %v598 = vpack.c.b16 %v466, %v460
        %v599 = vpack.c.b16 %v467, %v461
        %v600 = vpack.c.b16 %v468, %v462
        %v601 = vpack.c.b16 %v469, %v463
        %v602 = vpack.c.b16 %v476, %v470
        %v603 = vpack.c.b16 %v477, %v471
        %v604 = vpack.c.b16 %v478, %v472
        %v605 = vpack.c.b16 %v479, %v473
        %v606 = vpack.c.b16 %v480, %v474
        %v607 = vpack.c.b16 %v481, %v475
        %v608 = vpack.c.b16 %v488, %v482
        %v609 = vpack.c.b16 %v489, %v483
        %v610 = vpack.c.b16 %v490, %v484
        %v611 = vpack.c.b16 %v491, %v485
        %v612 = vpack.c.b16 %v492, %v486
        %v613 = vpack.c.b16 %v493, %v487
        %v614 = vpack.c.b16 %v500, %v494
        %v615 = vpack.c.b16 %v501, %v495
        %v616 = vpack.c.b16 %v502, %v496
        %v617 = vpack.c.b16 %v503, %v497
        %v618 = vpack.c.b16 %v504, %v498
        %v619 = vpack.c.b16 %v505, %v499
        %v620 = vpack.c.b16 %v512, %v506
        %v621 = vpack.c.b16 %v513, %v507
        %v622 = vpack.c.b16 %v514, %v508
        %v623 = vpack.c.b16 %v515, %v509
        %v624 = vpack.c.b16 %v516, %v510
        %v625 = vpack.c.b16 %v517, %v511
        %v626 = vpack.c.b16 %v524, %v518
        %v627 = vpack.c.b16 %v525, %v519
        %v628 = vpack.c.b16 %v526, %v520
        %v629 = vpack.c.b16 %v527, %v521
        %v630 = vpack.c.b16 %v528, %v522
        %v631 = vpack.c.b16 %v529, %v523
        %v632 = vpack.c.b16 %v536, %v530
        %v633 = vpack.c.b16 %v537, %v531
        %v634 = vpack.c.b16 %v538, %v532
        %v635 = vpack.c.b16 %v539, %v533
        %v636 = vpack.c.b16 %v540, %v534
        %v637 = vpack.c.b16 %v541, %v535
        %v638 = vpack.c.b16 %v548, %v542
        %v639 = vpack.c.b16 %v549, %v543
        %v640 = vpack.c.b16 %v550, %v544
        %v641 = vpack.c.b16 %v551, %v545
        %v642 = vpack.c.b16 %v552, %v546
        %v643 = vpack.c.b16 %v553, %v547
        %v644 = vpack.c.b16 %v560, %v554
        %v645 = vpack.c.b16 %v561, %v555
        %v646 = vpack.c.b16 %v562, %v556
        %v647 = vpack.c.b16 %v563, %v557
        %v648 = vpack.c.b16 %v564, %v558
        %v649 = vpack.c.b16 %v565, %v559
        %v737 = vcombine.high %v301, %v301
        %v738 = vcombine.high %v302, %v302
        %v739 = vcombine.high %v303, %v303
        %vm743 = vcmask 785408
        %v745 = vsel %vm743, %v312, 0
        %747 = vmatprep.subr.bf16.mxu0 %v567
        %748 = vmatpush1.bf16.msra.mxu0 %v566
        %749 = vmatprep.subr.bf16.mxu0 %v573
        %750 = vmatpush1.bf16.msra.mxu0 %v572
        %751 = vmatprep.subr.bf16.mxu0 %v579
        %752 = vmatpush1.bf16.msra.mxu0 %v578
        %753 = vmatprep.subr.bf16.mxu0 %v585
        %754 = vmatpush1.bf16.msra.mxu0 %v584
        %755 = vmatprep.subr.bf16.mxu0 %v591
        %756 = vmatpush1.bf16.msra.mxu0 %v590
        %757 = vmatprep.subr.bf16.mxu0 %v597
        %758 = vmatpush1.bf16.msra.mxu0 %v596
        %759 = vmatprep.subr.bf16.mxu0 %v603
        %760 = vmatpush1.bf16.msra.mxu0 %v602
        %761 = vmatprep.subr.bf16.mxu0 %v609
        %762 = vmatpush1.bf16.msra.mxu0 %v608
        %763 = vmatprep.subr.bf16.mxu0 %v615
        %764 = vmatpush1.bf16.msra.mxu0 %v614
        %765 = vmatprep.subr.bf16.mxu0 %v621
        %766 = vmatpush1.bf16.msra.mxu0 %v620
        %767 = vmatprep.subr.bf16.mxu0 %v627
        %768 = vmatpush1.bf16.msra.mxu0 %v626
        %769 = vmatprep.subr.bf16.mxu0 %v633
        %770 = vmatpush1.bf16.msra.mxu0 %v632
        %771 = vmatprep.subr.bf16.mxu0 %v639
        %772 = vmatpush1.bf16.msra.mxu0 %v638
        %773 = vmatprep.subr.bf16.mxu0 %v645
        %774 = vmatpush1.bf16.msra.mxu0 %v644
        %775 = vmatprep.subr.bf16.mxu0 0
        %776 = vmatpush1.bf16.msra.mxu0 0
        %777 = vmatprep.subr.bf16.mxu0 0
        %778 = vmatpush1.bf16.msra.mxu0 0
        %779 = vmatprep.mubr.bf16.mxu0 %v745
        %780 = vmatmul.mubr.bf16.gmra.mrb[0].mxu0 %v311
        %v781 = vpop.f32.mrb[0].mxu0
        %v782 = vadd.f32 %v301, %v781
        %v783 = vpop.f32.mrb[0].mxu0
        %v784 = vadd.f32 %v737, %v783
        %v785 = vpop.f32.mrb[0].mxu0
        %v786 = vpop.f32.mrb[0].mxu0
        %787 = vdwg.mxu0
        %788 = vmatprep.subr.bf16.mxu0 %v569
        %789 = vmatpush1.bf16.msra.mxu0 %v568
        %790 = vmatprep.subr.bf16.mxu0 %v575
        %791 = vmatpush1.bf16.msra.mxu0 %v574
        %792 = vmatprep.subr.bf16.mxu0 %v581
        %793 = vmatpush1.bf16.msra.mxu0 %v580
        %794 = vmatprep.subr.bf16.mxu0 %v587
        %795 = vmatpush1.bf16.msra.mxu0 %v586
        %796 = vmatprep.subr.bf16.mxu0 %v593
        %797 = vmatpush1.bf16.msra.mxu0 %v592
        %798 = vmatprep.subr.bf16.mxu0 %v599
        %799 = vmatpush1.bf16.msra.mxu0 %v598
        %800 = vmatprep.subr.bf16.mxu0 %v605
        %801 = vmatpush1.bf16.msra.mxu0 %v604
        %802 = vmatprep.subr.bf16.mxu0 %v611
        %803 = vmatpush1.bf16.msra.mxu0 %v610
        %804 = vmatprep.subr.bf16.mxu0 %v617
        %805 = vmatpush1.bf16.msra.mxu0 %v616
        %806 = vmatprep.subr.bf16.mxu0 %v623
        %807 = vmatpush1.bf16.msra.mxu0 %v622
        %808 = vmatprep.subr.bf16.mxu0 %v629
        %809 = vmatpush1.bf16.msra.mxu0 %v628
        %810 = vmatprep.subr.bf16.mxu0 %v635
        %811 = vmatpush1.bf16.msra.mxu0 %v634
        %812 = vmatprep.subr.bf16.mxu0 %v641
        %813 = vmatpush1.bf16.msra.mxu0 %v640
        %814 = vmatprep.subr.bf16.mxu0 %v647
        %815 = vmatpush1.bf16.msra.mxu0 %v646
        %816 = vmatprep.subr.bf16.mxu0 0
        %817 = vmatpush1.bf16.msra.mxu0 0
        %818 = vmatprep.subr.bf16.mxu0 0
        %819 = vmatpush1.bf16.msra.mxu0 0
        %820 = vmatprep.mubr.bf16.mxu0 %v745
        %821 = vmatmul.mubr.bf16.gmra.mrb[0].mxu0 %v311
        %v822 = vpop.f32.mrb[0].mxu0
        %v823 = vadd.f32 %v302, %v822
        %v824 = vpop.f32.mrb[0].mxu0
        %v825 = vadd.f32 %v738, %v824
        %v826 = vpop.f32.mrb[0].mxu0
        %v827 = vpop.f32.mrb[0].mxu0
        %828 = vdwg.mxu0
        %829 = vmatprep.subr.bf16.mxu0 %v571
        %830 = vmatpush1.bf16.msra.mxu0 %v570
        %831 = vmatprep.subr.bf16.mxu0 %v577
        %832 = vmatpush1.bf16.msra.mxu0 %v576
        %833 = vmatprep.subr.bf16.mxu0 %v583
        %834 = vmatpush1.bf16.msra.mxu0 %v582
        %835 = vmatprep.subr.bf16.mxu0 %v589
        %836 = vmatpush1.bf16.msra.mxu0 %v588
        %837 = vmatprep.subr.bf16.mxu0 %v595
        %838 = vmatpush1.bf16.msra.mxu0 %v594
        %839 = vmatprep.subr.bf16.mxu0 %v601
        %840 = vmatpush1.bf16.msra.mxu0 %v600
        %841 = vmatprep.subr.bf16.mxu0 %v607
        %842 = vmatpush1.bf16.msra.mxu0 %v606
        %843 = vmatprep.subr.bf16.mxu0 %v613
        %844 = vmatpush1.bf16.msra.mxu0 %v612
        %845 = vmatprep.subr.bf16.mxu0 %v619
        %846 = vmatpush1.bf16.msra.mxu0 %v618
        %847 = vmatprep.subr.bf16.mxu0 %v625
        %848 = vmatpush1.bf16.msra.mxu0 %v624
        %849 = vmatprep.subr.bf16.mxu0 %v631
        %850 = vmatpush1.bf16.msra.mxu0 %v630
        %851 = vmatprep.subr.bf16.mxu0 %v637
        %852 = vmatpush1.bf16.msra.mxu0 %v636
        %853 = vmatprep.subr.bf16.mxu0 %v643
        %854 = vmatpush1.bf16.msra.mxu0 %v642
        %855 = vmatprep.subr.bf16.mxu0 %v649
        %856 = vmatpush1.bf16.msra.mxu0 %v648
        %857 = vmatprep.subr.bf16.mxu0 0
        %858 = vmatpush1.bf16.msra.mxu0 0
        %859 = vmatprep.subr.bf16.mxu0 0
        %860 = vmatpush1.bf16.msra.mxu0 0
        %861 = vmatprep.mubr.bf16.mxu0 %v745
        %862 = vmatmul.mubr.bf16.gmra.mrb[0].mxu0 %v311
        %v863 = vpop.f32.mrb[0].mxu0
        %v864 = vadd.f32 %v303, %v863
        %v865 = vpop.f32.mrb[0].mxu0
        %v866 = vadd.f32 %v739, %v865
        %v867 = vpop.f32.mrb[0].mxu0
        %v868 = vpop.f32.mrb[0].mxu0
        %869 = vdwg.mxu0
        %v876 = vcombine.low %v782, %v784
        %v877 = vcombine.low %v823, %v825
        %v878 = vcombine.low %v864, %v866
        %882 = vst [vmem:[%s213] sm:$0xff] %v876
        %883 = vst [vmem:[%s213 + $0x8] sm:$0xff] %v877
        %884 = vst [vmem:[%s213 + $0x10] sm:$0xff] %v878
        %s885 = smul.u32 6, %s17
        %p886 = scmp.lt.s32.totalorder %s885, 11
        %s887 = scalar_select %p886, %s885, 11
        %s888 = smul.addr %s887, 4
        %s889 = scalar_lea.vmem %s3, %s888
        // Predicated region
        $region37: #{_smpl_forward.2} parent=31 // pred_check
          %p890 = pneg %p108
        $region38: #{_smpl_forward.2} parent=31 // pred_check_branch
          %892 = sbr.rel (%p890) target = $region40
        $region39: #{_smpl_forward.2} parent=31 // pred_region
          %s893 = smul.u32 6, %s17
        $region40: #{_smpl_forward.2} parent=31 // pred_fallthru
          _
      $region32: #{_smpl_forward.2} parent=5 // pred_fallthru
        _
      %p894 = scmp.le.s32.totalorder 2, %s12
      // Predicated region
      $region41: #{_smpl_forward.2} parent=5 // pred_check
        %p895 = pneg %p894
      $region42: #{_smpl_forward.2} parent=5 // pred_check_branch
        %897 = sbr.rel (%p895) target = $region44
      $region43: #{_smpl_forward.2} parent=5 // pred_region
        %s898 = ssub.s32 %s12, 2
        // Predicated region
        $region45: #{_smpl_forward.2} parent=43 // pred_check
          %p899 = pneg %p114
        $region46: #{_smpl_forward.2} parent=43 // pred_check_branch
          %901 = sbr.rel (%p899) target = $region48
        $region47: #{_smpl_forward.2} parent=43 // pred_region
          %s902 = smul.u32 6, %s18
          %p903 = scmp.lt.s32.totalorder %s902, 11
          %s904 = scalar_select %p903, %s902, 11
          %s905 = smul.addr %s904, 4
          %s906 = scalar_lea.vmem %s3, %s905
        $region48: #{_smpl_forward.2} parent=43 // pred_fallthru
          _
      $region44: #{_smpl_forward.2} parent=5 // pred_fallthru
        _
    $region6: #{_smpl_forward.2} parent=1 // loop_footer
      %s16 = sadd.s32 1, %s12
    $region7: #{_smpl_forward.2} parent=1 // loop_footer_branch
      %11 = sbr.rel target = $region3
    $region8: #{_smpl_forward.2} parent=1 // loop_exit
      _
    %907 = vsyncpa [#allocation3], 1
    %s908 = scalar_lea.sflag [#allocation3], 1
    %909 = vsyncpa %s908, 1

// kernel: _smpl_forward.3
$region0: #{_smpl_forward.3}
  #allocation0 [shape = 'u32[]', space=smem, size = 0x4, offset = 0x4, fixed_abs, tag = 'smem constant byte address 0x4 - core index']
  #allocation1 [shape = 'u32[144,128]{1,0:T(1,128)}', space=vmem, size = 0x12000, scoped, tag = 'internal scratch']
  %s0 = inlined_call_operand.vmem [shape: f32[24,512], index: 0, kind: input, shape index: {}]
  %s1 = inlined_call_operand.vmem [shape: f32[32,24], index: 1, kind: input, shape index: {}]
  %s2 = inlined_call_operand.vmem [shape: f32[2,3,512], index: 2, kind: input, shape index: {}]
  %s3 = inlined_call_operand.vmem [shape: f32[2,3,512], index: 3, kind: output, shape index: {}]
  %s4 = sld [smem:[#allocation0]]
  $region22: #{_smpl_forward.3} parent=0
    _
  %s6 = ssub.s32 1, %s4
  %s7 = scalar_select 0, %s6, %s4
  // Predicated region
  $region2: #{_smpl_forward.3} parent=0 // pred_check
    _
  $region3: #{_smpl_forward.3} parent=0 // pred_check_branch
    %9 = sbr.rel (0) target = $region5
  $region4: #{_smpl_forward.3} parent=0 // pred_region
    _
  $region5: #{_smpl_forward.3} parent=0 // pred_fallthru
    _
  // Predicated region
  $region6: #{_smpl_forward.3} parent=0 // pred_check
    _
  $region7: #{_smpl_forward.3} parent=0 // pred_check_branch
    %11 = sbr.rel (0) target = $region9
  $region8: #{_smpl_forward.3} parent=0 // pred_region
    _
  $region9: #{_smpl_forward.3} parent=0 // pred_fallthru
    _
  // Predicated region
  $region10: #{_smpl_forward.3} parent=0 // pred_check
    _
  $region11: #{_smpl_forward.3} parent=0 // pred_check_branch
    %13 = sbr.rel (0) target = $region13
  $region12: #{_smpl_forward.3} parent=0 // pred_region
    _
  $region13: #{_smpl_forward.3} parent=0 // pred_fallthru
    _
  %v14 = vld [vmem:[%s1] sm:$0xff]
  %v15 = vld [vmem:[%s1 + $0x8] sm:$0xff]
  %v16 = vld [vmem:[%s1 + $0x10] sm:$0xff]
  %v17 = vld [vmem:[%s1 + $0x18] sm:$0xff]
  %v18 = vld [vmem:[%s0] sm:$0xff]
  %v19 = vld [vmem:[%s0 + $0x8] sm:$0xff]
  %v20 = vld [vmem:[%s0 + $0x10] sm:$0xff]
  %v21 = vld [vmem:[%s0 + $0x18] sm:$0xff]
  %v22 = vld [vmem:[%s0 + $0x20] sm:$0xff]
  %v23 = vld [vmem:[%s0 + $0x28] sm:$0xff]
  %v24 = vld [vmem:[%s0 + $0x30] sm:$0xff]
  %v25 = vld [vmem:[%s0 + $0x38] sm:$0xff]
  %v26 = vld [vmem:[%s0 + $0x40] sm:$0xff]
  %v27 = vld [vmem:[%s0 + $0x48] sm:$0xff]
  %v28 = vld [vmem:[%s0 + $0x50] sm:$0xff]
  %v29 = vld [vmem:[%s0 + $0x58] sm:$0xff]
  %vm30 = vcmask 195584
  %v32 = vsel %vm30, %v14, 0
  %v35 = vsel %vm30, %v15, 0
  %v38 = vsel %vm30, %v16, 0
  %v41 = vsel %vm30, %v17, 0
  %43 = vmatprep.subr.mxu0 %v19
  %44 = vmatpush1.msra.mxu0 %v18
  %45 = vmatprep.subr.mxu0 %v23
  %46 = vmatpush1.msra.mxu0 %v22
  %47 = vmatprep.subr.mxu0 %v27
  %48 = vmatpush1.msra.mxu0 %v26
  %49 = vmatprep.subr.mxu0 0.0
  %50 = vmatpush1.msra.mxu0 0.0
  %51 = vmatprep.subr.mxu0 0.0
  %52 = vmatpush1.msra.mxu0 0.0
  %53 = vmatprep.subr.mxu0 0.0
  %54 = vmatpush1.msra.mxu0 0.0
  %55 = vmatprep.subr.mxu0 0.0
  %56 = vmatpush1.msra.mxu0 0.0
  %57 = vmatprep.subr.mxu0 0.0
  %58 = vmatpush1.msra.mxu0 0.0
  %59 = vmatprep.subr.mxu0 0.0
  %60 = vmatpush1.msra.mxu0 0.0
  %61 = vmatprep.subr.mxu0 0.0
  %62 = vmatpush1.msra.mxu0 0.0
  %63 = vmatprep.subr.mxu0 0.0
  %64 = vmatpush1.msra.mxu0 0.0
  %65 = vmatprep.subr.mxu0 0.0
  %66 = vmatpush1.msra.mxu0 0.0
  %67 = vmatprep.subr.mxu0 0.0
  %68 = vmatpush1.msra.mxu0 0.0
  %69 = vmatprep.subr.mxu0 0.0
  %70 = vmatpush1.msra.mxu0 0.0
  %71 = vmatprep.subr.mxu0 0.0
  %72 = vmatpush1.msra.mxu0 0.0
  %73 = vmatprep.subr.mxu0 0.0
  %74 = vmatpush1.msra.mxu0 0.0
  %75 = vmatprep.subr.mxu0 0.0
  %76 = vmatpush1.msra.mxu0 0.0
  %77 = vmatprep.subr.mxu0 0.0
  %78 = vmatpush1.msra.mxu0 0.0
  %79 = vmatprep.subr.mxu0 0.0
  %80 = vmatpush1.msra.mxu0 0.0
  %81 = vmatprep.subr.mxu0 0.0
  %82 = vmatpush1.msra.mxu0 0.0
  %83 = vmatprep.subr.mxu0 0.0
  %84 = vmatpush1.msra.mxu0 0.0
  %85 = vmatprep.subr.mxu0 0.0
  %86 = vmatpush1.msra.mxu0 0.0
  %87 = vmatprep.subr.mxu0 0.0
  %88 = vmatpush1.msra.mxu0 0.0
  %89 = vmatprep.subr.mxu0 0.0
  %90 = vmatpush1.msra.mxu0 0.0
  %91 = vmatprep.subr.mxu0 0.0
  %92 = vmatpush1.msra.mxu0 0.0
  %93 = vmatprep.subr.mxu0 0.0
  %94 = vmatpush1.msra.mxu0 0.0
  %95 = vmatprep.subr.mxu0 0.0
  %96 = vmatpush1.msra.mxu0 0.0
  %97 = vmatprep.subr.mxu0 0.0
  %98 = vmatpush1.msra.mxu0 0.0
  %99 = vmatprep.subr.mxu0 0.0
  %100 = vmatpush1.msra.mxu0 0.0
  %101 = vmatprep.subr.mxu0 0.0
  %102 = vmatpush1.msra.mxu0 0.0
  %103 = vmatprep.subr.mxu0 0.0
  %104 = vmatpush1.msra.mxu0 0.0
  %105 = vmatprep.subr.mxu0 0.0
  %106 = vmatpush1.msra.mxu0 0.0
  %107 = vmatprep.mubr.f32.mxu0 0.0
  %108 = vmatmul.mubr.f32.gmra.mrb[0].mxu0 %v32
  %v109 = vpop.f32.mrb[0].mxu0
  %v110 = vadd.f32 0.0, %v109
  %v111 = vpop.f32.mrb[0].mxu0
  %v112 = vadd.f32 0.0, %v111
  %113 = vmatprep.mubr.f32.mxu0 0.0
  %114 = vmatmul.mubr.f32.gmra.mrb[0].mxu0 %v35
  %v115 = vpop.f32.mrb[0].mxu0
  %v116 = vadd.f32 0.0, %v115
  %v117 = vpop.f32.mrb[0].mxu0
  %v118 = vadd.f32 0.0, %v117
  %119 = vmatprep.mubr.f32.mxu0 0.0
  %120 = vmatmul.mubr.f32.gmra.mrb[0].mxu0 %v38
  %v121 = vpop.f32.mrb[0].mxu0
  %v122 = vadd.f32 0.0, %v121
  %v123 = vpop.f32.mrb[0].mxu0
  %v124 = vadd.f32 0.0, %v123
  %125 = vmatprep.mubr.f32.mxu0 0.0
  %126 = vmatmul.mubr.f32.gmra.mrb[0].mxu0 %v41
  %v127 = vpop.f32.mrb[0].mxu0
  %v128 = vadd.f32 0.0, %v127
  %v129 = vpop.f32.mrb[0].mxu0
  %v130 = vadd.f32 0.0, %v129
  %131 = vdwg.mxu0
  %132 = vmatprep.subr.mxu0 %v21
  %133 = vmatpush1.msra.mxu0 %v20
  %134 = vmatprep.subr.mxu0 %v25
  %135 = vmatpush1.msra.mxu0 %v24
  %136 = vmatprep.subr.mxu0 %v29
  %137 = vmatpush1.msra.mxu0 %v28
  %138 = vmatprep.subr.mxu0 0.0
  %139 = vmatpush1.msra.mxu0 0.0
  %140 = vmatprep.subr.mxu0 0.0
  %141 = vmatpush1.msra.mxu0 0.0
  %142 = vmatprep.subr.mxu0 0.0
  %143 = vmatpush1.msra.mxu0 0.0
  %144 = vmatprep.subr.mxu0 0.0
  %145 = vmatpush1.msra.mxu0 0.0
  %146 = vmatprep.subr.mxu0 0.0
  %147 = vmatpush1.msra.mxu0 0.0
  %148 = vmatprep.subr.mxu0 0.0
  %149 = vmatpush1.msra.mxu0 0.0
  %150 = vmatprep.subr.mxu0 0.0
  %151 = vmatpush1.msra.mxu0 0.0
  %152 = vmatprep.subr.mxu0 0.0
  %153 = vmatpush1.msra.mxu0 0.0
  %154 = vmatprep.subr.mxu0 0.0
  %155 = vmatpush1.msra.mxu0 0.0
  %156 = vmatprep.subr.mxu0 0.0
  %157 = vmatpush1.msra.mxu0 0.0
  %158 = vmatprep.subr.mxu0 0.0
  %159 = vmatpush1.msra.mxu0 0.0
  %160 = vmatprep.subr.mxu0 0.0
  %161 = vmatpush1.msra.mxu0 0.0
  %162 = vmatprep.subr.mxu0 0.0
  %163 = vmatpush1.msra.mxu0 0.0
  %164 = vmatprep.subr.mxu0 0.0
  %165 = vmatpush1.msra.mxu0 0.0
  %166 = vmatprep.subr.mxu0 0.0
  %167 = vmatpush1.msra.mxu0 0.0
  %168 = vmatprep.subr.mxu0 0.0
  %169 = vmatpush1.msra.mxu0 0.0
  %170 = vmatprep.subr.mxu0 0.0
  %171 = vmatpush1.msra.mxu0 0.0
  %172 = vmatprep.subr.mxu0 0.0
  %173 = vmatpush1.msra.mxu0 0.0
  %174 = vmatprep.subr.mxu0 0.0
  %175 = vmatpush1.msra.mxu0 0.0
  %176 = vmatprep.subr.mxu0 0.0
  %177 = vmatpush1.msra.mxu0 0.0
  %178 = vmatprep.subr.mxu0 0.0
  %179 = vmatpush1.msra.mxu0 0.0
  %180 = vmatprep.subr.mxu0 0.0
  %181 = vmatpush1.msra.mxu0 0.0
  %182 = vmatprep.subr.mxu0 0.0
  %183 = vmatpush1.msra.mxu0 0.0
  %184 = vmatprep.subr.mxu0 0.0
  %185 = vmatpush1.msra.mxu0 0.0
  %186 = vmatprep.subr.mxu0 0.0
  %187 = vmatpush1.msra.mxu0 0.0
  %188 = vmatprep.subr.mxu0 0.0
  %189 = vmatpush1.msra.mxu0 0.0
  %190 = vmatprep.subr.mxu0 0.0
  %191 = vmatpush1.msra.mxu0 0.0
  %192 = vmatprep.subr.mxu0 0.0
  %193 = vmatpush1.msra.mxu0 0.0
  %194 = vmatprep.subr.mxu0 0.0
  %195 = vmatpush1.msra.mxu0 0.0
  %196 = vmatprep.mubr.f32.mxu0 0.0
  %197 = vmatmul.mubr.f32.gmra.mrb[0].mxu0 %v32
  %v198 = vpop.f32.mrb[0].mxu0
  %v199 = vadd.f32 0.0, %v198
  %v200 = vpop.f32.mrb[0].mxu0
  %v201 = vadd.f32 0.0, %v200
  %202 = vmatprep.mubr.f32.mxu0 0.0
  %203 = vmatmul.mubr.f32.gmra.mrb[0].mxu0 %v35
  %v204 = vpop.f32.mrb[0].mxu0
  %v205 = vadd.f32 0.0, %v204
  %v206 = vpop.f32.mrb[0].mxu0
  %v207 = vadd.f32 0.0, %v206
  %208 = vmatprep.mubr.f32.mxu0 0.0
  %209 = vmatmul.mubr.f32.gmra.mrb[0].mxu0 %v38
  %v210 = vpop.f32.mrb[0].mxu0
  %v211 = vadd.f32 0.0, %v210
  %v212 = vpop.f32.mrb[0].mxu0
  %v213 = vadd.f32 0.0, %v212
  %214 = vmatprep.mubr.f32.mxu0 0.0
  %215 = vmatmul.mubr.f32.gmra.mrb[0].mxu0 %v41
  %v216 = vpop.f32.mrb[0].mxu0
  %v217 = vadd.f32 0.0, %v216
  %v218 = vpop.f32.mrb[0].mxu0
  %v219 = vadd.f32 0.0, %v218
  %220 = vdwg.mxu0
  %v221 = vld [vmem:[%s2] sm:$0x77]
  %v222 = vld [vmem:[%s2 + $0x8] sm:$0x77]
  %v225 = vlaneseq
  %v226 = vshrl.u32 %v225, 7
  %v227 = vsub.s32 0, %v226
  %v228 = vrot.slane %v221, %v227
  %v229 = vlaneseq
  %v230 = vshrl.u32 %v229, 7
  %v231 = vsub.s32 4, %v230
  %v232 = vrot.slane %v221, %v231
  %v233 = vlaneseq
  %v234 = vshrl.u32 %v233, 7
  %v235 = vsub.s32 0, %v234
  %v236 = vrot.slane %v222, %v235
  %v237 = vlaneseq
  %v238 = vshrl.u32 %v237, 7
  %v239 = vsub.s32 4, %v238
  %v240 = vrot.slane %v222, %v239
  %v245 = vlaneseq
  %v246 = vshrl.u32 %v245, 7
  %v247 = vsub.s32 0, %v246
  %v248 = vrot.slane %v228, %v247
  %v249 = vlaneseq
  %v250 = vshrl.u32 %v249, 7
  %v251 = vsub.s32 0, %v250
  %v252 = vrot.slane %v232, %v251
  %v253 = vlaneseq
  %v254 = vshrl.u32 %v253, 7
  %v255 = vsub.s32 0, %v254
  %v256 = vrot.slane %v236, %v255
  %v257 = vlaneseq
  %v258 = vshrl.u32 %v257, 7
  %v259 = vsub.s32 0, %v258
  %v260 = vrot.slane %v240, %v259
  %v261 = vmul.f32 %v110, %v248
  %v262 = vmul.f32 %v112, %v252
  %v263 = vmul.f32 %v199, %v256
  %v264 = vmul.f32 %v201, %v260
  %v265 = vlaneseq
  %v266 = vshrl.u32 %v265, 7
  %v267 = vsub.s32 1, %v266
  %v268 = vrot.slane %v221, %v267
  %v269 = vlaneseq
  %v270 = vshrl.u32 %v269, 7
  %v271 = vsub.s32 5, %v270
  %v272 = vrot.slane %v221, %v271
  %v273 = vlaneseq
  %v274 = vshrl.u32 %v273, 7
  %v275 = vsub.s32 1, %v274
  %v276 = vrot.slane %v222, %v275
  %v277 = vlaneseq
  %v278 = vshrl.u32 %v277, 7
  %v279 = vsub.s32 5, %v278
  %v280 = vrot.slane %v222, %v279
  %v285 = vlaneseq
  %v286 = vshrl.u32 %v285, 7
  %v287 = vsub.s32 1, %v286
  %v288 = vrot.slane %v268, %v287
  %v289 = vlaneseq
  %v290 = vshrl.u32 %v289, 7
  %v291 = vsub.s32 1, %v290
  %v292 = vrot.slane %v272, %v291
  %v293 = vlaneseq
  %v294 = vshrl.u32 %v293, 7
  %v295 = vsub.s32 1, %v294
  %v296 = vrot.slane %v276, %v295
  %v297 = vlaneseq
  %v298 = vshrl.u32 %v297, 7
  %v299 = vsub.s32 1, %v298
  %v300 = vrot.slane %v280, %v299
  %v301 = vmul.f32 %v110, %v288
  %v302 = vmul.f32 %v112, %v292
  %v303 = vmul.f32 %v199, %v296
  %v304 = vmul.f32 %v201, %v300
  %v309 = vrot.slane %v301, 3
  %v310 = vrot.slane %v302, 3
  %v311 = vrot.slane %v303, 3
  %v312 = vrot.slane %v304, 3
  %v317 = vadd.f32 %v261, %v309
  %v318 = vadd.f32 %v262, %v310
  %v319 = vadd.f32 %v263, %v311
  %v320 = vadd.f32 %v264, %v312
  %v321 = vlaneseq
  %v322 = vshrl.u32 %v321, 7
  %v323 = vsub.s32 2, %v322
  %v324 = vrot.slane %v221, %v323
  %v325 = vlaneseq
  %v326 = vshrl.u32 %v325, 7
  %v327 = vsub.s32 6, %v326
  %v328 = vrot.slane %v221, %v327
  %v329 = vlaneseq
  %v330 = vshrl.u32 %v329, 7
  %v331 = vsub.s32 2, %v330
  %v332 = vrot.slane %v222, %v331
  %v333 = vlaneseq
  %v334 = vshrl.u32 %v333, 7
  %v335 = vsub.s32 6, %v334
  %v336 = vrot.slane %v222, %v335
  %v341 = vlaneseq
  %v342 = vshrl.u32 %v341, 7
  %v343 = vsub.s32 2, %v342
  %v344 = vrot.slane %v324, %v343
  %v345 = vlaneseq
  %v346 = vshrl.u32 %v345, 7
  %v347 = vsub.s32 2, %v346
  %v348 = vrot.slane %v328, %v347
  %v349 = vlaneseq
  %v350 = vshrl.u32 %v349, 7
  %v351 = vsub.s32 2, %v350
  %v352 = vrot.slane %v332, %v351
  %v353 = vlaneseq
  %v354 = vshrl.u32 %v353, 7
  %v355 = vsub.s32 2, %v354
  %v356 = vrot.slane %v336, %v355
  %v357 = vmul.f32 %v110, %v344
  %v358 = vmul.f32 %v112, %v348
  %v359 = vmul.f32 %v199, %v352
  %v360 = vmul.f32 %v201, %v356
  %v361 = vmul.f32 %v116, %v344
  %v362 = vmul.f32 %v118, %v348
  %v363 = vmul.f32 %v205, %v352
  %v364 = vmul.f32 %v207, %v356
  %vm373 = vcmask 1041408
  %v374 = vrot.slane %v357, 6
  %v375 = vrot.slane %v361, 6
  %v376 = vsel %vm373, %v374, %v375
  %v377 = vrot.slane %v358, 6
  %v378 = vrot.slane %v362, 6
  %v379 = vsel %vm373, %v377, %v378
  %v380 = vrot.slane %v359, 6
  %v381 = vrot.slane %v363, 6
  %v382 = vsel %vm373, %v380, %v381
  %v383 = vrot.slane %v360, 6
  %v384 = vrot.slane %v364, 6
  %v385 = vsel %vm373, %v383, %v384
  %v390 = vadd.f32 %v317, %v376
  %v391 = vadd.f32 %v318, %v379
  %v392 = vadd.f32 %v319, %v382
  %v393 = vadd.f32 %v320, %v385
  %v398 = vrot.slane %v116, 1
  %v399 = vrot.slane %v118, 1
  %v400 = vrot.slane %v205, 1
  %v401 = vrot.slane %v207, 1
  %v406 = vadd.f32 %v390, %v398
  %v407 = vadd.f32 %v391, %v399
  %v408 = vadd.f32 %v392, %v400
  %v409 = vadd.f32 %v393, %v401
  %v414 = vcombine.low %v406, %v407
  %v415 = vcombine.low %v408, %v409
  %418 = vst [vmem:[%s3] sm:$0x77] %v414
  %419 = vst [vmem:[%s3 + $0x8] sm:$0x77] %v415
  %s420 = scalar_lea.vmem %s2, 16
  %v421 = vld [vmem:[%s420] sm:$0x77]
  %v422 = vld [vmem:[%s420 + $0x8] sm:$0x77]
  %v425 = vlaneseq
  %v426 = vshrl.u32 %v425, 7
  %v427 = vsub.s32 0, %v426
  %v428 = vrot.slane %v421, %v427
  %v429 = vlaneseq
  %v430 = vshrl.u32 %v429, 7
  %v431 = vsub.s32 4, %v430
  %v432 = vrot.slane %v421, %v431
  %v433 = vlaneseq
  %v434 = vshrl.u32 %v433, 7
  %v435 = vsub.s32 0, %v434
  %v436 = vrot.slane %v422, %v435
  %v437 = vlaneseq
  %v438 = vshrl.u32 %v437, 7
  %v439 = vsub.s32 4, %v438
  %v440 = vrot.slane %v422, %v439
  %v445 = vlaneseq
  %v446 = vshrl.u32 %v445, 7
  %v447 = vsub.s32 0, %v446
  %v448 = vrot.slane %v428, %v447
  %v449 = vlaneseq
  %v450 = vshrl.u32 %v449, 7
  %v451 = vsub.s32 0, %v450
  %v452 = vrot.slane %v432, %v451
  %v453 = vlaneseq
  %v454 = vshrl.u32 %v453, 7
  %v455 = vsub.s32 0, %v454
  %v456 = vrot.slane %v436, %v455
  %v457 = vlaneseq
  %v458 = vshrl.u32 %v457, 7
  %v459 = vsub.s32 0, %v458
  %v460 = vrot.slane %v440, %v459
  %v461 = vmul.f32 %v122, %v448
  %v462 = vmul.f32 %v124, %v452
  %v463 = vmul.f32 %v211, %v456
  %v464 = vmul.f32 %v213, %v460
  %v465 = vlaneseq
  %v466 = vshrl.u32 %v465, 7
  %v467 = vsub.s32 1, %v466
  %v468 = vrot.slane %v421, %v467
  %v469 = vlaneseq
  %v470 = vshrl.u32 %v469, 7
  %v471 = vsub.s32 5, %v470
  %v472 = vrot.slane %v421, %v471
  %v473 = vlaneseq
  %v474 = vshrl.u32 %v473, 7
  %v475 = vsub.s32 1, %v474
  %v476 = vrot.slane %v422, %v475
  %v477 = vlaneseq
  %v478 = vshrl.u32 %v477, 7
  %v479 = vsub.s32 5, %v478
  %v480 = vrot.slane %v422, %v479
  %v485 = vlaneseq
  %v486 = vshrl.u32 %v485, 7
  %v487 = vsub.s32 1, %v486
  %v488 = vrot.slane %v468, %v487
  %v489 = vlaneseq
  %v490 = vshrl.u32 %v489, 7
  %v491 = vsub.s32 1, %v490
  %v492 = vrot.slane %v472, %v491
  %v493 = vlaneseq
  %v494 = vshrl.u32 %v493, 7
  %v495 = vsub.s32 1, %v494
  %v496 = vrot.slane %v476, %v495
  %v497 = vlaneseq
  %v498 = vshrl.u32 %v497, 7
  %v499 = vsub.s32 1, %v498
  %v500 = vrot.slane %v480, %v499
  %v501 = vmul.f32 %v122, %v488
  %v502 = vmul.f32 %v124, %v492
  %v503 = vmul.f32 %v211, %v496
  %v504 = vmul.f32 %v213, %v500
  %v509 = vrot.slane %v501, 3
  %v510 = vrot.slane %v502, 3
  %v511 = vrot.slane %v503, 3
  %v512 = vrot.slane %v504, 3
  %v517 = vadd.f32 %v461, %v509
  %v518 = vadd.f32 %v462, %v510
  %v519 = vadd.f32 %v463, %v511
  %v520 = vadd.f32 %v464, %v512
  %v521 = vlaneseq
  %v522 = vshrl.u32 %v521, 7
  %v523 = vsub.s32 2, %v522
  %v524 = vrot.slane %v421, %v523
  %v525 = vlaneseq
  %v526 = vshrl.u32 %v525, 7
  %v527 = vsub.s32 6, %v526
  %v528 = vrot.slane %v421, %v527
  %v529 = vlaneseq
  %v530 = vshrl.u32 %v529, 7
  %v531 = vsub.s32 2, %v530
  %v532 = vrot.slane %v422, %v531
  %v533 = vlaneseq
  %v534 = vshrl.u32 %v533, 7
  %v535 = vsub.s32 6, %v534
  %v536 = vrot.slane %v422, %v535
  %v541 = vlaneseq
  %v542 = vshrl.u32 %v541, 7
  %v543 = vsub.s32 2, %v542
  %v544 = vrot.slane %v524, %v543
  %v545 = vlaneseq
  %v546 = vshrl.u32 %v545, 7
  %v547 = vsub.s32 2, %v546
  %v548 = vrot.slane %v528, %v547
  %v549 = vlaneseq
  %v550 = vshrl.u32 %v549, 7
  %v551 = vsub.s32 2, %v550
  %v552 = vrot.slane %v532, %v551
  %v553 = vlaneseq
  %v554 = vshrl.u32 %v553, 7
  %v555 = vsub.s32 2, %v554
  %v556 = vrot.slane %v536, %v555
  %v557 = vmul.f32 %v122, %v544
  %v558 = vmul.f32 %v124, %v548
  %v559 = vmul.f32 %v211, %v552
  %v560 = vmul.f32 %v213, %v556
  %v561 = vmul.f32 %v128, %v544
  %v562 = vmul.f32 %v130, %v548
  %v563 = vmul.f32 %v217, %v552
  %v564 = vmul.f32 %v219, %v556
  %v573 = vrot.slane %v557, 6
  %v574 = vrot.slane %v561, 6
  %v575 = vsel %vm373, %v573, %v574
  %v576 = vrot.slane %v558, 6
  %v577 = vrot.slane %v562, 6
  %v578 = vsel %vm373, %v576, %v577
  %v579 = vrot.slane %v559, 6
  %v580 = vrot.slane %v563, 6
  %v581 = vsel %vm373, %v579, %v580
  %v582 = vrot.slane %v560, 6
  %v583 = vrot.slane %v564, 6
  %v584 = vsel %vm373, %v582, %v583
  %v589 = vadd.f32 %v517, %v575
  %v590 = vadd.f32 %v518, %v578
  %v591 = vadd.f32 %v519, %v581
  %v592 = vadd.f32 %v520, %v584
  %v597 = vrot.slane %v128, 1
  %v598 = vrot.slane %v130, 1
  %v599 = vrot.slane %v217, 1
  %v600 = vrot.slane %v219, 1
  %v605 = vadd.f32 %v589, %v597
  %v606 = vadd.f32 %v590, %v598
  %v607 = vadd.f32 %v591, %v599
  %v608 = vadd.f32 %v592, %v600
  %v613 = vcombine.low %v605, %v606
  %v614 = vcombine.low %v607, %v608
  %s617 = scalar_lea.vmem %s3, 16
  %618 = vst [vmem:[%s617] sm:$0x77] %v613
  %619 = vst [vmem:[%s617 + $0x8] sm:$0x77] %v614
  // Predicated region
  $region14: #{_smpl_forward.3} parent=0 // pred_check
    _
  $region15: #{_smpl_forward.3} parent=0 // pred_check_branch
    %621 = sbr.rel (0) target = $region17
  $region16: #{_smpl_forward.3} parent=0 // pred_region
    _
  $region17: #{_smpl_forward.3} parent=0 // pred_fallthru
    _
  // Predicated region
  $region18: #{_smpl_forward.3} parent=0 // pred_check
    _
  $region19: #{_smpl_forward.3} parent=0 // pred_check_branch
    %623 = sbr.rel (0) target = $region21
  $region20: #{_smpl_forward.3} parent=0 // pred_region
    _
  $region21: #{_smpl_forward.3} parent=0 // pred_fallthru
    _

</llo_original>
